<compile_context>
chip_gen: v7x
topology: tpu7x:2x2x1
jax: 0.10.0
libtpu: 0.0.40
codegen_flags: <defaults>
</compile_context>

<pallas_src>
import functools

import jax
import jax.numpy as jnp
from jax.experimental import pallas as pl
from jax.experimental.pallas import tpu as pltpu


# --------------------------------------------------------------------------
# Pallas kernel factory: whole BasicBlock forward for one packed (C, B_blk*L)
# slab (B_blk samples laid out contiguously along the lane axis).
# --------------------------------------------------------------------------
def make_basic_block_kernel(has_projection: bool):
    def kernel(*refs):
        if has_projection:
            (x_ref, w1_ref, s1_ref, b1_ref, w2_ref, s2_ref, b2_ref,
             fc1w_ref, fc1b_ref, sfc_ref, bfc_ref, fc2w_ref, fc2b_ref,
             lm_ref, rm_ref, gap_ref, bc_ref,
             scw_ref, ssc_ref, bsc_ref, o_ref) = refs
        else:
            (x_ref, w1_ref, s1_ref, b1_ref, w2_ref, s2_ref, b2_ref,
             fc1w_ref, fc1b_ref, sfc_ref, bfc_ref, fc2w_ref, fc2b_ref,
             lm_ref, rm_ref, gap_ref, bc_ref, o_ref) = refs
            scw_ref = ssc_ref = bsc_ref = None

        x = x_ref[...]                     # (Cin, Lb) bf16 — fed straight to the MXU
        Lb = x.shape[1]
        lm = lm_ref[...]                   # (1, Lb) f32, 0 at each sample's first column
        rm = rm_ref[...]                   # (1, Lb) f32, 0 at each sample's last column

        def conv3(inp_bf16, w_ref):
            # 1-D conv, kernel_size=3, stride=1, padding=1, no bias.
            # Three bf16 MXU dots on the SAME un-shifted operand; the +-1 taps are
            # obtained by rolling the f32 results (XLU slot, otherwise idle) and
            # masking per-sample boundaries with the hoisted edge masks (one VPU mul).
            y0 = jnp.dot(w_ref[0], inp_bf16, preferred_element_type=jnp.float32)
            y1 = jnp.dot(w_ref[1], inp_bf16, preferred_element_type=jnp.float32)
            y2 = jnp.dot(w_ref[2], inp_bf16, preferred_element_type=jnp.float32)
            return (pltpu.roll(y0, 1, axis=1) * lm      # tap k=0 -> x[l-1]
                    + y1                                 # tap k=1 -> x[l]
                    + pltpu.roll(y2, Lb - 1, axis=1) * rm)  # tap k=2 -> x[l+1]

        # ---- residual branch: conv1 -> BN -> ReLU -> conv2 -> BN -------------
        h = conv3(x, w1_ref)
        h = jnp.maximum(h * s1_ref[...] + b1_ref[...], 0.0)        # BN1 + ReLU (f32 VPU)
        h = conv3(h.astype(jnp.bfloat16), w2_ref)                  # bf16 only at the MXU
        h = h * s2_ref[...] + b2_ref[...]                          # BN2

        # ---- Shrinkage: per-sample GAP -> fc -> BN -> ReLU -> fc -> sigmoid ---
        x_abs = jnp.abs(h)                                         # (Cout, Lb) f32
        # block-diagonal (Lb, B_blk) matrix of 1/L -> exact per-sample mean
        avg = jnp.dot(x_abs, gap_ref[...], preferred_element_type=jnp.float32)  # (Cout, B)
        z = jnp.dot(fc1w_ref[...], avg, preferred_element_type=jnp.float32) + fc1b_ref[...]
        z = jnp.maximum(z * sfc_ref[...] + bfc_ref[...], 0.0)      # BN + ReLU
        z = jnp.dot(fc2w_ref[...], z, preferred_element_type=jnp.float32) + fc2b_ref[...]
        z = jax.nn.sigmoid(z)                                      # EUP
        # threshold per (channel, sample), broadcast back to (Cout, Lb)
        thr = jnp.dot(avg * z, bc_ref[...], preferred_element_type=jnp.float32)
        n_sub = jnp.maximum(x_abs - thr, 0.0)
        # sign(h) * n_sub  (n_sub == 0 whenever h == 0, so a select is exact)
        res = jnp.where(h >= 0.0, n_sub, -n_sub)

        # ---- shortcut ---------------------------------------------------------
        if has_projection:
            sc = jnp.dot(scw_ref[...], x, preferred_element_type=jnp.float32)
            sc = sc * ssc_ref[...] + bsc_ref[...]
        else:
            sc = x.astype(jnp.float32)                             # identity

        # ---- add + final ReLU, bf16 writeback ----------------------------------
        o_ref[...] = jnp.maximum(res + sc, 0.0).astype(o_ref.dtype)

    return kernel


# --------------------------------------------------------------------------
# Wrapper helpers
# --------------------------------------------------------------------------
def _fold_bn(g, b, m, v, eps=1e-5):
    s = (g / jnp.sqrt(v + eps)).astype(jnp.float32)
    return s.reshape(-1, 1), (b - m * s).astype(jnp.float32).reshape(-1, 1)


def _vmem_limit_bytes():
    # Per-generation budget: v7x 64 MiB physical -> ~48 MiB; v5e/v6e 128 MiB -> 96 MiB.
    try:
        cap = int(pltpu.get_tpu_info().vmem_capacity_bytes)
    except Exception:
        cap = 64 * 1024 * 1024          # assume the smallest generation if query fails
    return min(cap * 3 // 4, 96 * 1024 * 1024)


def _pick_block_batch(n, c_out, l, vmem_limit):
    # Pack samples along the lane axis until the minor dim is ~>=512 lanes
    # (unmasked lane-dense vst + amortized per-grid-step overhead), capped by a
    # rough per-step VMEM activation budget (~8 f32 (Cout, B*L) slabs).
    # B_blk must divide N so the grid tiles the batch exactly; prefer keeping the
    # resulting grid even so both v7x TensorCores get equal work.
    want = max(1, -(-512 // l))                                    # ceil(512 / L)
    budget = max(1, (vmem_limit // 4) // max(1, 8 * c_out * l * 4))
    cap = max(1, min(want, budget))
    best = 1
    for d in range(1, n + 1):
        if n % d == 0 and d <= cap:
            best = d
    return best


def _const_spec(a, single_buffer):
    # Constant (grid-invariant) input: pinned block, optionally single-buffered
    # (its block index never changes, so double-buffering only wastes VMEM).
    idx = lambda n, _nd=a.ndim: (0,) * _nd
    if single_buffer and hasattr(pl, "Buffered"):
        try:
            return pl.BlockSpec(a.shape, idx, pipeline_mode=pl.Buffered(1))
        except TypeError:
            pass
    return pl.BlockSpec(a.shape, idx)


# --------------------------------------------------------------------------
# JAX wrapper: parameter folding + sample packing + pallas_call.
# --------------------------------------------------------------------------
@functools.partial(jax.jit,
                   static_argnames=("stride", "block_batch", "single_buffer_consts"))
def basic_block_forward(x_ncl, p, *, stride=1, block_batch=None,
                        single_buffer_consts=True):
    assert stride == 1, "stride > 1 downsampling not implemented"
    N, Cin, L = x_ncl.shape
    Cout = p["conv1_w"].shape[0]
    has_projection = "sc_w" in p
    if not has_projection:
        assert Cin == Cout, "identity shortcut requires in_channels == out_channels"

    vmem_limit = _vmem_limit_bytes()
    B_blk = block_batch if block_batch is not None else _pick_block_batch(
        N, Cout, L, vmem_limit)
    assert N % B_blk == 0
    G = N // B_blk
    Lb = B_blk * L

    # bf16 activations through the whole pipeline (halves HBM traffic, MXU-native).
    x_bf = x_ncl.astype(jnp.bfloat16)
    # Pack B_blk samples along the lane axis: (N, C, L) -> (G, C, B_blk*L).
    x_pk = x_bf.reshape(G, B_blk, Cin, L).transpose(0, 2, 1, 3).reshape(G, Cin, Lb)

    # Conv taps tap-major (3, Cout, Ci) in bf16; BN folded to per-channel scale/shift.
    w1 = jnp.transpose(p["conv1_w"], (2, 0, 1)).astype(jnp.bfloat16)
    w2 = jnp.transpose(p["conv2_w"], (2, 0, 1)).astype(jnp.bfloat16)
    s1, b1 = _fold_bn(*p["bn1"])
    s2, b2 = _fold_bn(*p["bn2"])
    fc1w = p["fc1_w"].astype(jnp.float32)
    fc1b = p["fc1_b"].reshape(-1, 1).astype(jnp.float32)
    sfc, bfc = _fold_bn(*p["bn_fc"])
    fc2w = p["fc2_w"].astype(jnp.float32)
    fc2b = p["fc2_b"].reshape(-1, 1).astype(jnp.float32)

    # Hoisted per-sample edge masks + block-diagonal GAP / broadcast matrices.
    pos = jnp.arange(Lb, dtype=jnp.int32) % L
    sid = jnp.arange(Lb, dtype=jnp.int32) // L
    lmask = (pos != 0).astype(jnp.float32).reshape(1, Lb)
    rmask = (pos != L - 1).astype(jnp.float32).reshape(1, Lb)
    gap = ((sid[:, None] == jnp.arange(B_blk)[None, :]).astype(jnp.float32) / L)  # (Lb,B)
    bcast = (jnp.arange(B_blk)[:, None] == sid[None, :]).astype(jnp.float32)      # (B,Lb)

    args = [x_pk, w1, s1, b1, w2, s2, b2, fc1w, fc1b, sfc, bfc, fc2w, fc2b,
            lmask, rmask, gap, bcast]
    if has_projection:
        scw = p["sc_w"][:, :, 0].astype(jnp.bfloat16)                 # (Cout, Cin)
        ssc, bsc = _fold_bn(*p["bn_sc"])
        args += [scw, ssc, bsc]

    in_specs = [pl.BlockSpec((None, Cin, Lb), lambda n: (n, 0, 0))]   # one slab / step
    in_specs += [_const_spec(a, single_buffer_consts) for a in args[1:]]

    out = pl.pallas_call(
        make_basic_block_kernel(has_projection),
        out_shape=jax.ShapeDtypeStruct((G, Cout, Lb), jnp.bfloat16),
        grid=(G,),
        in_specs=in_specs,
        out_specs=pl.BlockSpec((None, Cout, Lb), lambda n: (n, 0, 0)),
        compiler_params=pltpu.CompilerParams(
            dimension_semantics=("parallel",),      # megacore split over the batch grid
            vmem_limit_bytes=int(vmem_limit),
        ),
    )(*args)

    # Unpack (G, Cout, B_blk*L) -> (N, Cout, L); stays bf16 for downstream blocks.
    return out.reshape(G, Cout, B_blk, L).transpose(0, 2, 1, 3).reshape(N, Cout, L)


# --------------------------------------------------------------------------
# Plain-JAX f32 reference (same math) for a correctness self-check.
# --------------------------------------------------------------------------
def basic_block_reference(x_ncl, p):
    eps = 1e-5

    def bn(x, g, b, m, v):  # per-channel over axis 1
        shape = (1, -1) + (1,) * (x.ndim - 2)
        return (x - m.reshape(shape)) / jnp.sqrt(v.reshape(shape) + eps) \
            * g.reshape(shape) + b.reshape(shape)

    def conv3(x, w):  # x (N,Ci,L), w (Co,Ci,3), pad=1 stride=1
        xp = jnp.pad(x, ((0, 0), (0, 0), (1, 1)))
        L = x.shape[2]
        return sum(jnp.einsum("nil,oi->nol", xp[:, :, k:k + L], w[:, :, k])
                   for k in range(3))

    h = jnp.maximum(bn(conv3(x_ncl, p["conv1_w"]), *p["bn1"]), 0.0)
    h = bn(conv3(h, p["conv2_w"]), *p["bn2"])
    x_raw, x_abs = h, jnp.abs(h)
    avg = jnp.mean(x_abs, axis=2)
    z = avg @ p["fc1_w"].T + p["fc1_b"]
    z = jnp.maximum(bn(z, *p["bn_fc"]), 0.0)
    z = jax.nn.sigmoid(z @ p["fc2_w"].T + p["fc2_b"])
    thresh = (avg * z)[:, :, None]
    res = jnp.sign(x_raw) * jnp.maximum(x_abs - thresh, 0.0)
    if "sc_w" in p:
        sc = bn(jnp.einsum("nil,oi->nol", x_ncl, p["sc_w"][:, :, 0]), *p["bn_sc"])
    else:
        sc = x_ncl
    return jnp.maximum(res + sc, 0.0)


def make_params(key, cin, cout, with_projection=True):
    ks = jax.random.split(key, 12)

    def q16(a):  # keep MXU weights bf16-exact so kernel/reference agree closely
        return a.astype(jnp.bfloat16).astype(jnp.float32)

    def bn_params(k):
        k1, k2, k3, k4 = jax.random.split(k, 4)
        gamma = 1.0 + 0.1 * jax.random.normal(k1, (cout,))
        beta = 0.1 * jax.random.normal(k2, (cout,))
        mean = 0.1 * jax.random.normal(k3, (cout,))
        var = 0.5 + jax.random.uniform(k4, (cout,))
        return (gamma, beta, mean, var)

    p = {
        "conv1_w": q16(0.2 * jax.random.normal(ks[0], (cout, cin, 3))),
        "bn1": bn_params(ks[1]),
        "conv2_w": q16(0.2 * jax.random.normal(ks[2], (cout, cout, 3))),
        "bn2": bn_params(ks[3]),
        "fc1_w": 0.2 * jax.random.normal(ks[4], (cout, cout)),
        "fc1_b": 0.1 * jax.random.normal(ks[5], (cout,)),
        "bn_fc": bn_params(ks[6]),
        "fc2_w": 0.2 * jax.random.normal(ks[7], (cout, cout)),
        "fc2_b": 0.1 * jax.random.normal(ks[8], (cout,)),
    }
    if with_projection:
        p["sc_w"] = q16(0.2 * jax.random.normal(ks[9], (cout, cin, 1)))
        p["bn_sc"] = bn_params(ks[10])
    return p


def _run(x, p):
    try:
        return jax.block_until_ready(basic_block_forward(x, p))
    except Exception:
        # pl.Buffered(1) on constant specs unsupported by this jax/Mosaic build:
        # retry with default double-buffered constants (perf-only difference).
        return jax.block_until_ready(
            basic_block_forward(x, p, single_buffer_consts=False))


if __name__ == "__main__":
    key = jax.random.PRNGKey(0)
    k_x1, k_p1, k_x2, k_p2 = jax.random.split(key, 4)

    # --- case 1: projection shortcut (in_channels != out_channels) ---------
    N, Cin, Cout, L = 2, 4, 8, 16
    x1 = jax.random.normal(k_x1, (N, Cin, L), dtype=jnp.float32).astype(jnp.bfloat16)
    p1 = make_params(k_p1, Cin, Cout, with_projection=True)
    out1 = _run(x1, p1)
    ref1 = basic_block_reference(x1.astype(jnp.float32), p1)
    assert out1.shape == (N, Cout, L)
    assert jnp.allclose(out1.astype(jnp.float32), ref1, atol=5e-2, rtol=5e-2), \
        "projection case mismatch"

    # --- case 2: identity shortcut (in_channels == out_channels) -----------
    x2 = jax.random.normal(k_x2, (N, Cout, L), dtype=jnp.float32).astype(jnp.bfloat16)
    p2 = make_params(k_p2, Cout, Cout, with_projection=False)
    out2 = _run(x2, p2)
    ref2 = basic_block_reference(x2.astype(jnp.float32), p2)
    assert out2.shape == (N, Cout, L)
    assert jnp.allclose(out2.astype(jnp.float32), ref2, atol=5e-2, rtol=5e-2), \
        "identity case mismatch"

    print("KERNEL_OK")
</pallas_src>

<mosaic_0001>
module attributes {stable_mosaic.version = 11 : i64} {
  func.func @kernel(%arg0: i32, %arg1: memref<1x4x32xbf16, #tpu.memory_space<vmem>>, %arg2: memref<3x8x4xbf16, #tpu.memory_space<vmem>>, %arg3: memref<8x1xf32, #tpu.memory_space<vmem>>, %arg4: memref<8x1xf32, #tpu.memory_space<vmem>>, %arg5: memref<3x8x8xbf16, #tpu.memory_space<vmem>>, %arg6: memref<8x1xf32, #tpu.memory_space<vmem>>, %arg7: memref<8x1xf32, #tpu.memory_space<vmem>>, %arg8: memref<8x8xf32, #tpu.memory_space<vmem>>, %arg9: memref<8x1xf32, #tpu.memory_space<vmem>>, %arg10: memref<8x1xf32, #tpu.memory_space<vmem>>, %arg11: memref<8x1xf32, #tpu.memory_space<vmem>>, %arg12: memref<8x8xf32, #tpu.memory_space<vmem>>, %arg13: memref<8x1xf32, #tpu.memory_space<vmem>>, %arg14: memref<1x32xf32, #tpu.memory_space<vmem>>, %arg15: memref<1x32xf32, #tpu.memory_space<vmem>>, %arg16: memref<32x2xf32, #tpu.memory_space<vmem>>, %arg17: memref<2x32xf32, #tpu.memory_space<vmem>>, %arg18: memref<8x4xbf16, #tpu.memory_space<vmem>>, %arg19: memref<8x1xf32, #tpu.memory_space<vmem>>, %arg20: memref<8x1xf32, #tpu.memory_space<vmem>>, %arg21: memref<1x8x32xbf16, #tpu.memory_space<vmem>>) attributes {dimension_semantics = [#tpu.dimension_semantics<parallel>], iteration_bounds = array<i64: 1>, scalar_prefetch = 0 : i64, scratch_operands = 0 : i64, tpu.core_type = #tpu.core_type<tc>, window_params = [{transform_indices = @transform_0, window_bounds = array<i64: 1, 4, 32>}, {pipeline_mode = #tpu.pipeline_mode<synchronous>, transform_indices = @transform_1, window_bounds = array<i64: 3, 8, 4>}, {pipeline_mode = #tpu.pipeline_mode<synchronous>, transform_indices = @transform_2, window_bounds = array<i64: 8, 1>}, {pipeline_mode = #tpu.pipeline_mode<synchronous>, transform_indices = @transform_3, window_bounds = array<i64: 8, 1>}, {pipeline_mode = #tpu.pipeline_mode<synchronous>, transform_indices = @transform_4, window_bounds = array<i64: 3, 8, 8>}, {pipeline_mode = #tpu.pipeline_mode<synchronous>, transform_indices = @transform_5, window_bounds = array<i64: 8, 1>}, {pipeline_mode = #tpu.pipeline_mode<synchronous>, transform_indices = @transform_6, window_bounds = array<i64: 8, 1>}, {pipeline_mode = #tpu.pipeline_mode<synchronous>, transform_indices = @transform_7, window_bounds = array<i64: 8, 8>}, {pipeline_mode = #tpu.pipeline_mode<synchronous>, transform_indices = @transform_8, window_bounds = array<i64: 8, 1>}, {pipeline_mode = #tpu.pipeline_mode<synchronous>, transform_indices = @transform_9, window_bounds = array<i64: 8, 1>}, {pipeline_mode = #tpu.pipeline_mode<synchronous>, transform_indices = @transform_10, window_bounds = array<i64: 8, 1>}, {pipeline_mode = #tpu.pipeline_mode<synchronous>, transform_indices = @transform_11, window_bounds = array<i64: 8, 8>}, {pipeline_mode = #tpu.pipeline_mode<synchronous>, transform_indices = @transform_12, window_bounds = array<i64: 8, 1>}, {pipeline_mode = #tpu.pipeline_mode<synchronous>, transform_indices = @transform_13, window_bounds = array<i64: 1, 32>}, {pipeline_mode = #tpu.pipeline_mode<synchronous>, transform_indices = @transform_14, window_bounds = array<i64: 1, 32>}, {pipeline_mode = #tpu.pipeline_mode<synchronous>, transform_indices = @transform_15, window_bounds = array<i64: 32, 2>}, {pipeline_mode = #tpu.pipeline_mode<synchronous>, transform_indices = @transform_16, window_bounds = array<i64: 2, 32>}, {pipeline_mode = #tpu.pipeline_mode<synchronous>, transform_indices = @transform_17, window_bounds = array<i64: 8, 4>}, {pipeline_mode = #tpu.pipeline_mode<synchronous>, transform_indices = @transform_18, window_bounds = array<i64: 8, 1>}, {pipeline_mode = #tpu.pipeline_mode<synchronous>, transform_indices = @transform_19, window_bounds = array<i64: 8, 1>}, {transform_indices = @transform_20, window_bounds = array<i64: 1, 8, 32>}]} {
    %c0 = arith.constant 0 : index
    %c0_0 = arith.constant 0 : index
    %c0_1 = arith.constant 0 : index
    %0 = vector.load %arg1[%c0, %c0_0, %c0_1] : memref<1x4x32xbf16, #tpu.memory_space<vmem>>, vector<1x4x32xbf16>
    %1 = vector.shape_cast %0 : vector<1x4x32xbf16> to vector<4x32xbf16>
    %c0_2 = arith.constant 0 : index
    %c0_3 = arith.constant 0 : index
    %2 = vector.load %arg14[%c0_2, %c0_3] : memref<1x32xf32, #tpu.memory_space<vmem>>, vector<1x32xf32>
    %c0_4 = arith.constant 0 : index
    %c0_5 = arith.constant 0 : index
    %3 = vector.load %arg15[%c0_4, %c0_5] : memref<1x32xf32, #tpu.memory_space<vmem>>, vector<1x32xf32>
    %c0_6 = arith.constant 0 : index
    %c0_7 = arith.constant 0 : index
    %c0_8 = arith.constant 0 : index
    %4 = vector.load %arg2[%c0_6, %c0_7, %c0_8] : memref<3x8x4xbf16, #tpu.memory_space<vmem>>, vector<1x8x4xbf16>
    %5 = vector.shape_cast %4 : vector<1x8x4xbf16> to vector<8x4xbf16>
    %cst = arith.constant dense<0.000000e+00> : vector<8x32xf32>
    %6 = tpu.matmul %5, %1, %cst {dimension_numbers = #tpu.dot_dimension_numbers<[1], [0], [0], [1], [0, 0, 1, 1], [], []>} : vector<8x4xbf16>, vector<4x32xbf16>, vector<8x32xf32> -> vector<8x32xf32>
    %c1 = arith.constant 1 : index
    %c0_9 = arith.constant 0 : index
    %c0_10 = arith.constant 0 : index
    %7 = vector.load %arg2[%c1, %c0_9, %c0_10] : memref<3x8x4xbf16, #tpu.memory_space<vmem>>, vector<1x8x4xbf16>
    %8 = vector.shape_cast %7 : vector<1x8x4xbf16> to vector<8x4xbf16>
    %cst_11 = arith.constant dense<0.000000e+00> : vector<8x32xf32>
    %9 = tpu.matmul %8, %1, %cst_11 {dimension_numbers = #tpu.dot_dimension_numbers<[1], [0], [0], [1], [0, 0, 1, 1], [], []>} : vector<8x4xbf16>, vector<4x32xbf16>, vector<8x32xf32> -> vector<8x32xf32>
    %c2 = arith.constant 2 : index
    %c0_12 = arith.constant 0 : index
    %c0_13 = arith.constant 0 : index
    %10 = vector.load %arg2[%c2, %c0_12, %c0_13] : memref<3x8x4xbf16, #tpu.memory_space<vmem>>, vector<1x8x4xbf16>
    %11 = vector.shape_cast %10 : vector<1x8x4xbf16> to vector<8x4xbf16>
    %cst_14 = arith.constant dense<0.000000e+00> : vector<8x32xf32>
    %12 = tpu.matmul %11, %1, %cst_14 {dimension_numbers = #tpu.dot_dimension_numbers<[1], [0], [0], [1], [0, 0, 1, 1], [], []>} : vector<8x4xbf16>, vector<4x32xbf16>, vector<8x32xf32> -> vector<8x32xf32>
    %c1_i32 = arith.constant 1 : i32
    %13 = tpu.dynamic_rotate %6 by %c1_i32 dim 1 : vector<8x32xf32>, i32 -> vector<8x32xf32>
    %14 = vector.broadcast %2 : vector<1x32xf32> to vector<8x32xf32>
    %15 = arith.mulf %13, %14 : vector<8x32xf32>
    %16 = arith.addf %15, %9 : vector<8x32xf32>
    %c31_i32 = arith.constant 31 : i32
    %17 = tpu.dynamic_rotate %12 by %c31_i32 dim 1 : vector<8x32xf32>, i32 -> vector<8x32xf32>
    %18 = vector.broadcast %3 : vector<1x32xf32> to vector<8x32xf32>
    %19 = arith.mulf %17, %18 : vector<8x32xf32>
    %20 = arith.addf %16, %19 : vector<8x32xf32>
    %c0_15 = arith.constant 0 : index
    %c0_16 = arith.constant 0 : index
    %21 = vector.load %arg3[%c0_15, %c0_16] : memref<8x1xf32, #tpu.memory_space<vmem>>, vector<8x1xf32>
    %22 = vector.broadcast %21 : vector<8x1xf32> to vector<8x32xf32>
    %23 = arith.mulf %20, %22 : vector<8x32xf32>
    %c0_17 = arith.constant 0 : index
    %c0_18 = arith.constant 0 : index
    %24 = vector.load %arg4[%c0_17, %c0_18] : memref<8x1xf32, #tpu.memory_space<vmem>>, vector<8x1xf32>
    %25 = vector.broadcast %24 : vector<8x1xf32> to vector<8x32xf32>
    %26 = arith.addf %23, %25 : vector<8x32xf32>
    %cst_19 = arith.constant 0.000000e+00 : f32
    %27 = vector.broadcast %cst_19 : f32 to vector<8x32xf32>
    %28 = arith.maximumf %26, %27 : vector<8x32xf32>
    %29 = arith.truncf %28 : vector<8x32xf32> to vector<8x32xbf16>
    %c0_20 = arith.constant 0 : index
    %c0_21 = arith.constant 0 : index
    %c0_22 = arith.constant 0 : index
    %30 = vector.load %arg5[%c0_20, %c0_21, %c0_22] : memref<3x8x8xbf16, #tpu.memory_space<vmem>>, vector<1x8x8xbf16>
    %31 = vector.shape_cast %30 : vector<1x8x8xbf16> to vector<8x8xbf16>
    %cst_23 = arith.constant dense<0.000000e+00> : vector<8x32xf32>
    %32 = tpu.matmul %31, %29, %cst_23 {dimension_numbers = #tpu.dot_dimension_numbers<[1], [0], [0], [1], [0, 0, 1, 1], [], []>} : vector<8x8xbf16>, vector<8x32xbf16>, vector<8x32xf32> -> vector<8x32xf32>
    %c1_24 = arith.constant 1 : index
    %c0_25 = arith.constant 0 : index
    %c0_26 = arith.constant 0 : index
    %33 = vector.load %arg5[%c1_24, %c0_25, %c0_26] : memref<3x8x8xbf16, #tpu.memory_space<vmem>>, vector<1x8x8xbf16>
    %34 = vector.shape_cast %33 : vector<1x8x8xbf16> to vector<8x8xbf16>
    %cst_27 = arith.constant dense<0.000000e+00> : vector<8x32xf32>
    %35 = tpu.matmul %34, %29, %cst_27 {dimension_numbers = #tpu.dot_dimension_numbers<[1], [0], [0], [1], [0, 0, 1, 1], [], []>} : vector<8x8xbf16>, vector<8x32xbf16>, vector<8x32xf32> -> vector<8x32xf32>
    %c2_28 = arith.constant 2 : index
    %c0_29 = arith.constant 0 : index
    %c0_30 = arith.constant 0 : index
    %36 = vector.load %arg5[%c2_28, %c0_29, %c0_30] : memref<3x8x8xbf16, #tpu.memory_space<vmem>>, vector<1x8x8xbf16>
    %37 = vector.shape_cast %36 : vector<1x8x8xbf16> to vector<8x8xbf16>
    %cst_31 = arith.constant dense<0.000000e+00> : vector<8x32xf32>
    %38 = tpu.matmul %37, %29, %cst_31 {dimension_numbers = #tpu.dot_dimension_numbers<[1], [0], [0], [1], [0, 0, 1, 1], [], []>} : vector<8x8xbf16>, vector<8x32xbf16>, vector<8x32xf32> -> vector<8x32xf32>
    %c1_i32_32 = arith.constant 1 : i32
    %39 = tpu.dynamic_rotate %32 by %c1_i32_32 dim 1 : vector<8x32xf32>, i32 -> vector<8x32xf32>
    %40 = vector.broadcast %2 : vector<1x32xf32> to vector<8x32xf32>
    %41 = arith.mulf %39, %40 : vector<8x32xf32>
    %42 = arith.addf %41, %35 : vector<8x32xf32>
    %c31_i32_33 = arith.constant 31 : i32
    %43 = tpu.dynamic_rotate %38 by %c31_i32_33 dim 1 : vector<8x32xf32>, i32 -> vector<8x32xf32>
    %44 = vector.broadcast %3 : vector<1x32xf32> to vector<8x32xf32>
    %45 = arith.mulf %43, %44 : vector<8x32xf32>
    %46 = arith.addf %42, %45 : vector<8x32xf32>
    %c0_34 = arith.constant 0 : index
    %c0_35 = arith.constant 0 : index
    %47 = vector.load %arg6[%c0_34, %c0_35] : memref<8x1xf32, #tpu.memory_space<vmem>>, vector<8x1xf32>
    %48 = vector.broadcast %47 : vector<8x1xf32> to vector<8x32xf32>
    %49 = arith.mulf %46, %48 : vector<8x32xf32>
    %c0_36 = arith.constant 0 : index
    %c0_37 = arith.constant 0 : index
    %50 = vector.load %arg7[%c0_36, %c0_37] : memref<8x1xf32, #tpu.memory_space<vmem>>, vector<8x1xf32>
    %51 = vector.broadcast %50 : vector<8x1xf32> to vector<8x32xf32>
    %52 = arith.addf %49, %51 : vector<8x32xf32>
    %53 = math.absf %52 : vector<8x32xf32>
    %c0_38 = arith.constant 0 : index
    %c0_39 = arith.constant 0 : index
    %54 = vector.load %arg16[%c0_38, %c0_39] : memref<32x2xf32, #tpu.memory_space<vmem>>, vector<32x2xf32>
    %cst_40 = arith.constant dense<0.000000e+00> : vector<8x2xf32>
    %55 = tpu.matmul %53, %54, %cst_40 {dimension_numbers = #tpu.dot_dimension_numbers<[1], [0], [0], [1], [0, 0, 1, 1], [], []>} : vector<8x32xf32>, vector<32x2xf32>, vector<8x2xf32> -> vector<8x2xf32>
    %c0_41 = arith.constant 0 : index
    %c0_42 = arith.constant 0 : index
    %56 = vector.load %arg8[%c0_41, %c0_42] : memref<8x8xf32, #tpu.memory_space<vmem>>, vector<8x8xf32>
    %cst_43 = arith.constant dense<0.000000e+00> : vector<8x2xf32>
    %57 = tpu.matmul %56, %55, %cst_43 {dimension_numbers = #tpu.dot_dimension_numbers<[1], [0], [0], [1], [0, 0, 1, 1], [], []>} : vector<8x8xf32>, vector<8x2xf32>, vector<8x2xf32> -> vector<8x2xf32>
    %c0_44 = arith.constant 0 : index
    %c0_45 = arith.constant 0 : index
    %58 = vector.load %arg9[%c0_44, %c0_45] : memref<8x1xf32, #tpu.memory_space<vmem>>, vector<8x1xf32>
    %59 = vector.broadcast %58 : vector<8x1xf32> to vector<8x2xf32>
    %60 = arith.addf %57, %59 : vector<8x2xf32>
    %c0_46 = arith.constant 0 : index
    %c0_47 = arith.constant 0 : index
    %61 = vector.load %arg10[%c0_46, %c0_47] : memref<8x1xf32, #tpu.memory_space<vmem>>, vector<8x1xf32>
    %62 = vector.broadcast %61 : vector<8x1xf32> to vector<8x2xf32>
    %63 = arith.mulf %60, %62 : vector<8x2xf32>
    %c0_48 = arith.constant 0 : index
    %c0_49 = arith.constant 0 : index
    %64 = vector.load %arg11[%c0_48, %c0_49] : memref<8x1xf32, #tpu.memory_space<vmem>>, vector<8x1xf32>
    %65 = vector.broadcast %64 : vector<8x1xf32> to vector<8x2xf32>
    %66 = arith.addf %63, %65 : vector<8x2xf32>
    %cst_50 = arith.constant 0.000000e+00 : f32
    %67 = vector.broadcast %cst_50 : f32 to vector<8x2xf32>
    %68 = arith.maximumf %66, %67 : vector<8x2xf32>
    %c0_51 = arith.constant 0 : index
    %c0_52 = arith.constant 0 : index
    %69 = vector.load %arg12[%c0_51, %c0_52] : memref<8x8xf32, #tpu.memory_space<vmem>>, vector<8x8xf32>
    %cst_53 = arith.constant dense<0.000000e+00> : vector<8x2xf32>
    %70 = tpu.matmul %69, %68, %cst_53 {dimension_numbers = #tpu.dot_dimension_numbers<[1], [0], [0], [1], [0, 0, 1, 1], [], []>} : vector<8x8xf32>, vector<8x2xf32>, vector<8x2xf32> -> vector<8x2xf32>
    %c0_54 = arith.constant 0 : index
    %c0_55 = arith.constant 0 : index
    %71 = vector.load %arg13[%c0_54, %c0_55] : memref<8x1xf32, #tpu.memory_space<vmem>>, vector<8x1xf32>
    %72 = vector.broadcast %71 : vector<8x1xf32> to vector<8x2xf32>
    %73 = arith.addf %70, %72 : vector<8x2xf32>
    %74 = arith.negf %73 : vector<8x2xf32>
    %75 = math.exp %74 : vector<8x2xf32>
    %cst_56 = arith.constant 1.000000e+00 : f32
    %76 = vector.broadcast %cst_56 : f32 to vector<8x2xf32>
    %77 = arith.addf %76, %75 : vector<8x2xf32>
    %78 = arith.divf %76, %77 : vector<8x2xf32>
    %79 = arith.mulf %55, %78 : vector<8x2xf32>
    %c0_57 = arith.constant 0 : index
    %c0_58 = arith.constant 0 : index
    %80 = vector.load %arg17[%c0_57, %c0_58] : memref<2x32xf32, #tpu.memory_space<vmem>>, vector<2x32xf32>
    %cst_59 = arith.constant dense<0.000000e+00> : vector<8x32xf32>
    %81 = tpu.matmul %79, %80, %cst_59 {dimension_numbers = #tpu.dot_dimension_numbers<[1], [0], [0], [1], [0, 0, 1, 1], [], []>} : vector<8x2xf32>, vector<2x32xf32>, vector<8x32xf32> -> vector<8x32xf32>
    %82 = arith.subf %53, %81 : vector<8x32xf32>
    %cst_60 = arith.constant 0.000000e+00 : f32
    %83 = vector.broadcast %cst_60 : f32 to vector<8x32xf32>
    %84 = arith.maximumf %82, %83 : vector<8x32xf32>
    %cst_61 = arith.constant 0.000000e+00 : f32
    %85 = vector.broadcast %cst_61 : f32 to vector<8x32xf32>
    %86 = arith.cmpf oge, %52, %85 : vector<8x32xf32>
    %cst_62 = arith.constant 0.000000e+00 : f32
    %87 = vector.broadcast %cst_62 : f32 to vector<8x32xf32>
    %88 = arith.subf %87, %84 : vector<8x32xf32>
    %89 = arith.select %86, %84, %88 : vector<8x32xi1>, vector<8x32xf32>
    %c0_63 = arith.constant 0 : index
    %c0_64 = arith.constant 0 : index
    %90 = vector.load %arg18[%c0_63, %c0_64] : memref<8x4xbf16, #tpu.memory_space<vmem>>, vector<8x4xbf16>
    %cst_65 = arith.constant dense<0.000000e+00> : vector<8x32xf32>
    %91 = tpu.matmul %90, %1, %cst_65 {dimension_numbers = #tpu.dot_dimension_numbers<[1], [0], [0], [1], [0, 0, 1, 1], [], []>} : vector<8x4xbf16>, vector<4x32xbf16>, vector<8x32xf32> -> vector<8x32xf32>
    %c0_66 = arith.constant 0 : index
    %c0_67 = arith.constant 0 : index
    %92 = vector.load %arg19[%c0_66, %c0_67] : memref<8x1xf32, #tpu.memory_space<vmem>>, vector<8x1xf32>
    %93 = vector.broadcast %92 : vector<8x1xf32> to vector<8x32xf32>
    %94 = arith.mulf %91, %93 : vector<8x32xf32>
    %c0_68 = arith.constant 0 : index
    %c0_69 = arith.constant 0 : index
    %95 = vector.load %arg20[%c0_68, %c0_69] : memref<8x1xf32, #tpu.memory_space<vmem>>, vector<8x1xf32>
    %96 = vector.broadcast %95 : vector<8x1xf32> to vector<8x32xf32>
    %97 = arith.addf %94, %96 : vector<8x32xf32>
    %98 = arith.addf %89, %97 : vector<8x32xf32>
    %cst_70 = arith.constant 0.000000e+00 : f32
    %99 = vector.broadcast %cst_70 : f32 to vector<8x32xf32>
    %100 = arith.maximumf %98, %99 : vector<8x32xf32>
    %101 = arith.truncf %100 : vector<8x32xf32> to vector<8x32xbf16>
    %c0_71 = arith.constant 0 : index
    %c0_72 = arith.constant 0 : index
    %c0_73 = arith.constant 0 : index
    %102 = vector.load %arg21[%c0_71, %c0_72, %c0_73] : memref<1x8x32xbf16, #tpu.memory_space<vmem>>, vector<1x8x32xbf16>
    %103 = vector.shape_cast %102 : vector<1x8x32xbf16> to vector<8x32xbf16>
    %104 = vector.shape_cast %101 : vector<8x32xbf16> to vector<1x8x32xbf16>
    tpu.vector_store %arg21[%c0_71, %c0_72, %c0_73], %104 {strides = array<i32>} : memref<1x8x32xbf16, #tpu.memory_space<vmem>>, vector<1x8x32xbf16>,
    return
  }
  func.func @transform_0(%arg0: i32) -> (i32, i32, i32) {
    %c0_i32 = arith.constant 0 : i32
    %c0_i32_0 = arith.constant 0 : i32
    %c0_i32_1 = arith.constant 0 : i32
    return %arg0, %c0_i32, %c0_i32_0 : i32, i32, i32
  }
  func.func @transform_1(%arg0: i32) -> (i32, i32, i32) {
    %c0_i32 = arith.constant 0 : i32
    %c0_i32_0 = arith.constant 0 : i32
    %c0_i32_1 = arith.constant 0 : i32
    %c0_i32_2 = arith.constant 0 : i32
    return %c0_i32, %c0_i32_0, %c0_i32_1 : i32, i32, i32
  }
  func.func @transform_2(%arg0: i32) -> (i32, i32) {
    %c0_i32 = arith.constant 0 : i32
    %c0_i32_0 = arith.constant 0 : i32
    %c0_i32_1 = arith.constant 0 : i32
    return %c0_i32, %c0_i32_0 : i32, i32
  }
  func.func @transform_3(%arg0: i32) -> (i32, i32) {
    %c0_i32 = arith.constant 0 : i32
    %c0_i32_0 = arith.constant 0 : i32
    %c0_i32_1 = arith.constant 0 : i32
    return %c0_i32, %c0_i32_0 : i32, i32
  }
  func.func @transform_4(%arg0: i32) -> (i32, i32, i32) {
    %c0_i32 = arith.constant 0 : i32
    %c0_i32_0 = arith.constant 0 : i32
    %c0_i32_1 = arith.constant 0 : i32
    %c0_i32_2 = arith.constant 0 : i32
    return %c0_i32, %c0_i32_0, %c0_i32_1 : i32, i32, i32
  }
  func.func @transform_5(%arg0: i32) -> (i32, i32) {
    %c0_i32 = arith.constant 0 : i32
    %c0_i32_0 = arith.constant 0 : i32
    %c0_i32_1 = arith.constant 0 : i32
    return %c0_i32, %c0_i32_0 : i32, i32
  }
  func.func @transform_6(%arg0: i32) -> (i32, i32) {
    %c0_i32 = arith.constant 0 : i32
    %c0_i32_0 = arith.constant 0 : i32
    %c0_i32_1 = arith.constant 0 : i32
    return %c0_i32, %c0_i32_0 : i32, i32
  }
  func.func @transform_7(%arg0: i32) -> (i32, i32) {
    %c0_i32 = arith.constant 0 : i32
    %c0_i32_0 = arith.constant 0 : i32
    %c0_i32_1 = arith.constant 0 : i32
    return %c0_i32, %c0_i32_0 : i32, i32
  }
  func.func @transform_8(%arg0: i32) -> (i32, i32) {
    %c0_i32 = arith.constant 0 : i32
    %c0_i32_0 = arith.constant 0 : i32
    %c0_i32_1 = arith.constant 0 : i32
    return %c0_i32, %c0_i32_0 : i32, i32
  }
  func.func @transform_9(%arg0: i32) -> (i32, i32) {
    %c0_i32 = arith.constant 0 : i32
    %c0_i32_0 = arith.constant 0 : i32
    %c0_i32_1 = arith.constant 0 : i32
    return %c0_i32, %c0_i32_0 : i32, i32
  }
  func.func @transform_10(%arg0: i32) -> (i32, i32) {
    %c0_i32 = arith.constant 0 : i32
    %c0_i32_0 = arith.constant 0 : i32
    %c0_i32_1 = arith.constant 0 : i32
    return %c0_i32, %c0_i32_0 : i32, i32
  }
  func.func @transform_11(%arg0: i32) -> (i32, i32) {
    %c0_i32 = arith.constant 0 : i32
    %c0_i32_0 = arith.constant 0 : i32
    %c0_i32_1 = arith.constant 0 : i32
    return %c0_i32, %c0_i32_0 : i32, i32
  }
  func.func @transform_12(%arg0: i32) -> (i32, i32) {
    %c0_i32 = arith.constant 0 : i32
    %c0_i32_0 = arith.constant 0 : i32
    %c0_i32_1 = arith.constant 0 : i32
    return %c0_i32, %c0_i32_0 : i32, i32
  }
  func.func @transform_13(%arg0: i32) -> (i32, i32) {
    %c0_i32 = arith.constant 0 : i32
    %c0_i32_0 = arith.constant 0 : i32
    %c0_i32_1 = arith.constant 0 : i32
    return %c0_i32, %c0_i32_0 : i32, i32
  }
  func.func @transform_14(%arg0: i32) -> (i32, i32) {
    %c0_i32 = arith.constant 0 : i32
    %c0_i32_0 = arith.constant 0 : i32
    %c0_i32_1 = arith.constant 0 : i32
    return %c0_i32, %c0_i32_0 : i32, i32
  }
  func.func @transform_15(%arg0: i32) -> (i32, i32) {
    %c0_i32 = arith.constant 0 : i32
    %c0_i32_0 = arith.constant 0 : i32
    %c0_i32_1 = arith.constant 0 : i32
    return %c0_i32, %c0_i32_0 : i32, i32
  }
  func.func @transform_16(%arg0: i32) -> (i32, i32) {
    %c0_i32 = arith.constant 0 : i32
    %c0_i32_0 = arith.constant 0 : i32
    %c0_i32_1 = arith.constant 0 : i32
    return %c0_i32, %c0_i32_0 : i32, i32
  }
  func.func @transform_17(%arg0: i32) -> (i32, i32) {
    %c0_i32 = arith.constant 0 : i32
    %c0_i32_0 = arith.constant 0 : i32
    %c0_i32_1 = arith.constant 0 : i32
    return %c0_i32, %c0_i32_0 : i32, i32
  }
  func.func @transform_18(%arg0: i32) -> (i32, i32) {
    %c0_i32 = arith.constant 0 : i32
    %c0_i32_0 = arith.constant 0 : i32
    %c0_i32_1 = arith.constant 0 : i32
    return %c0_i32, %c0_i32_0 : i32, i32
  }
  func.func @transform_19(%arg0: i32) -> (i32, i32) {
    %c0_i32 = arith.constant 0 : i32
    %c0_i32_0 = arith.constant 0 : i32
    %c0_i32_1 = arith.constant 0 : i32
    return %c0_i32, %c0_i32_0 : i32, i32
  }
  func.func @transform_20(%arg0: i32) -> (i32, i32, i32) {
    %c0_i32 = arith.constant 0 : i32
    %c0_i32_0 = arith.constant 0 : i32
    %c0_i32_1 = arith.constant 0 : i32
    return %arg0, %c0_i32, %c0_i32_0 : i32, i32, i32
  }
}

module attributes {stable_mosaic.version = 11 : i64} {
  func.func @kernel(%arg0: i32, %arg1: memref<1x4x32xbf16, #tpu.memory_space<vmem>>, %arg2: memref<3x8x4xbf16, #tpu.memory_space<vmem>>, %arg3: memref<8x1xf32, #tpu.memory_space<vmem>>, %arg4: memref<8x1xf32, #tpu.memory_space<vmem>>, %arg5: memref<3x8x8xbf16, #tpu.memory_space<vmem>>, %arg6: memref<8x1xf32, #tpu.memory_space<vmem>>, %arg7: memref<8x1xf32, #tpu.memory_space<vmem>>, %arg8: memref<8x8xf32, #tpu.memory_space<vmem>>, %arg9: memref<8x1xf32, #tpu.memory_space<vmem>>, %arg10: memref<8x1xf32, #tpu.memory_space<vmem>>, %arg11: memref<8x1xf32, #tpu.memory_space<vmem>>, %arg12: memref<8x8xf32, #tpu.memory_space<vmem>>, %arg13: memref<8x1xf32, #tpu.memory_space<vmem>>, %arg14: memref<1x32xf32, #tpu.memory_space<vmem>>, %arg15: memref<1x32xf32, #tpu.memory_space<vmem>>, %arg16: memref<32x2xf32, #tpu.memory_space<vmem>>, %arg17: memref<2x32xf32, #tpu.memory_space<vmem>>, %arg18: memref<8x4xbf16, #tpu.memory_space<vmem>>, %arg19: memref<8x1xf32, #tpu.memory_space<vmem>>, %arg20: memref<8x1xf32, #tpu.memory_space<vmem>>, %arg21: memref<1x8x32xbf16, #tpu.memory_space<vmem>>) attributes {dimension_semantics = [#tpu.dimension_semantics<parallel>], iteration_bounds = array<i64: 1>, scalar_prefetch = 0 : i64, scratch_operands = 0 : i64, tpu.core_type = #tpu.core_type<tc>, window_params = [{transform_indices = @transform_0, window_bounds = array<i64: 1, 4, 32>}, {pipeline_mode = #tpu.pipeline_mode<synchronous>, transform_indices = @transform_1, window_bounds = array<i64: 3, 8, 4>}, {pipeline_mode = #tpu.pipeline_mode<synchronous>, transform_indices = @transform_2, window_bounds = array<i64: 8, 1>}, {pipeline_mode = #tpu.pipeline_mode<synchronous>, transform_indices = @transform_3, window_bounds = array<i64: 8, 1>}, {pipeline_mode = #tpu.pipeline_mode<synchronous>, transform_indices = @transform_4, window_bounds = array<i64: 3, 8, 8>}, {pipeline_mode = #tpu.pipeline_mode<synchronous>, transform_indices = @transform_5, window_bounds = array<i64: 8, 1>}, {pipeline_mode = #tpu.pipeline_mode<synchronous>, transform_indices = @transform_6, window_bounds = array<i64: 8, 1>}, {pipeline_mode = #tpu.pipeline_mode<synchronous>, transform_indices = @transform_7, window_bounds = array<i64: 8, 8>}, {pipeline_mode = #tpu.pipeline_mode<synchronous>, transform_indices = @transform_8, window_bounds = array<i64: 8, 1>}, {pipeline_mode = #tpu.pipeline_mode<synchronous>, transform_indices = @transform_9, window_bounds = array<i64: 8, 1>}, {pipeline_mode = #tpu.pipeline_mode<synchronous>, transform_indices = @transform_10, window_bounds = array<i64: 8, 1>}, {pipeline_mode = #tpu.pipeline_mode<synchronous>, transform_indices = @transform_11, window_bounds = array<i64: 8, 8>}, {pipeline_mode = #tpu.pipeline_mode<synchronous>, transform_indices = @transform_12, window_bounds = array<i64: 8, 1>}, {pipeline_mode = #tpu.pipeline_mode<synchronous>, transform_indices = @transform_13, window_bounds = array<i64: 1, 32>}, {pipeline_mode = #tpu.pipeline_mode<synchronous>, transform_indices = @transform_14, window_bounds = array<i64: 1, 32>}, {pipeline_mode = #tpu.pipeline_mode<synchronous>, transform_indices = @transform_15, window_bounds = array<i64: 32, 2>}, {pipeline_mode = #tpu.pipeline_mode<synchronous>, transform_indices = @transform_16, window_bounds = array<i64: 2, 32>}, {pipeline_mode = #tpu.pipeline_mode<synchronous>, transform_indices = @transform_17, window_bounds = array<i64: 8, 4>}, {pipeline_mode = #tpu.pipeline_mode<synchronous>, transform_indices = @transform_18, window_bounds = array<i64: 8, 1>}, {pipeline_mode = #tpu.pipeline_mode<synchronous>, transform_indices = @transform_19, window_bounds = array<i64: 8, 1>}, {transform_indices = @transform_20, window_bounds = array<i64: 1, 8, 32>}]} {
    %c0 = arith.constant 0 : index
    %c0_0 = arith.constant 0 : index
    %c0_1 = arith.constant 0 : index
    %0 = vector.load %arg1[%c0, %c0_0, %c0_1] : memref<1x4x32xbf16, #tpu.memory_space<vmem>>, vector<1x4x32xbf16>
    %1 = vector.shape_cast %0 : vector<1x4x32xbf16> to vector<4x32xbf16>
    %c0_2 = arith.constant 0 : index
    %c0_3 = arith.constant 0 : index
    %2 = vector.load %arg14[%c0_2, %c0_3] : memref<1x32xf32, #tpu.memory_space<vmem>>, vector<1x32xf32>
    %c0_4 = arith.constant 0 : index
    %c0_5 = arith.constant 0 : index
    %3 = vector.load %arg15[%c0_4, %c0_5] : memref<1x32xf32, #tpu.memory_space<vmem>>, vector<1x32xf32>
    %c0_6 = arith.constant 0 : index
    %c0_7 = arith.constant 0 : index
    %c0_8 = arith.constant 0 : index
    %4 = vector.load %arg2[%c0_6, %c0_7, %c0_8] : memref<3x8x4xbf16, #tpu.memory_space<vmem>>, vector<1x8x4xbf16>
    %5 = vector.shape_cast %4 : vector<1x8x4xbf16> to vector<8x4xbf16>
    %cst = arith.constant dense<0.000000e+00> : vector<8x32xf32>
    %6 = tpu.matmul %5, %1, %cst {dimension_numbers = #tpu.dot_dimension_numbers<[1], [0], [0], [1], [0, 0, 1, 1], [], []>} : vector<8x4xbf16>, vector<4x32xbf16>, vector<8x32xf32> -> vector<8x32xf32>
    %c1 = arith.constant 1 : index
    %c0_9 = arith.constant 0 : index
    %c0_10 = arith.constant 0 : index
    %7 = vector.load %arg2[%c1, %c0_9, %c0_10] : memref<3x8x4xbf16, #tpu.memory_space<vmem>>, vector<1x8x4xbf16>
    %8 = vector.shape_cast %7 : vector<1x8x4xbf16> to vector<8x4xbf16>
    %cst_11 = arith.constant dense<0.000000e+00> : vector<8x32xf32>
    %9 = tpu.matmul %8, %1, %cst_11 {dimension_numbers = #tpu.dot_dimension_numbers<[1], [0], [0], [1], [0, 0, 1, 1], [], []>} : vector<8x4xbf16>, vector<4x32xbf16>, vector<8x32xf32> -> vector<8x32xf32>
    %c2 = arith.constant 2 : index
    %c0_12 = arith.constant 0 : index
    %c0_13 = arith.constant 0 : index
    %10 = vector.load %arg2[%c2, %c0_12, %c0_13] : memref<3x8x4xbf16, #tpu.memory_space<vmem>>, vector<1x8x4xbf16>
    %11 = vector.shape_cast %10 : vector<1x8x4xbf16> to vector<8x4xbf16>
    %cst_14 = arith.constant dense<0.000000e+00> : vector<8x32xf32>
    %12 = tpu.matmul %11, %1, %cst_14 {dimension_numbers = #tpu.dot_dimension_numbers<[1], [0], [0], [1], [0, 0, 1, 1], [], []>} : vector<8x4xbf16>, vector<4x32xbf16>, vector<8x32xf32> -> vector<8x32xf32>
    %c1_i32 = arith.constant 1 : i32
    %13 = tpu.dynamic_rotate %6 by %c1_i32 dim 1 : vector<8x32xf32>, i32 -> vector<8x32xf32>
    %14 = vector.broadcast %2 : vector<1x32xf32> to vector<8x32xf32>
    %15 = arith.mulf %13, %14 : vector<8x32xf32>
    %16 = arith.addf %15, %9 : vector<8x32xf32>
    %c31_i32 = arith.constant 31 : i32
    %17 = tpu.dynamic_rotate %12 by %c31_i32 dim 1 : vector<8x32xf32>, i32 -> vector<8x32xf32>
    %18 = vector.broadcast %3 : vector<1x32xf32> to vector<8x32xf32>
    %19 = arith.mulf %17, %18 : vector<8x32xf32>
    %20 = arith.addf %16, %19 : vector<8x32xf32>
    %c0_15 = arith.constant 0 : index
    %c0_16 = arith.constant 0 : index
    %21 = vector.load %arg3[%c0_15, %c0_16] : memref<8x1xf32, #tpu.memory_space<vmem>>, vector<8x1xf32>
    %22 = vector.broadcast %21 : vector<8x1xf32> to vector<8x32xf32>
    %23 = arith.mulf %20, %22 : vector<8x32xf32>
    %c0_17 = arith.constant 0 : index
    %c0_18 = arith.constant 0 : index
    %24 = vector.load %arg4[%c0_17, %c0_18] : memref<8x1xf32, #tpu.memory_space<vmem>>, vector<8x1xf32>
    %25 = vector.broadcast %24 : vector<8x1xf32> to vector<8x32xf32>
    %26 = arith.addf %23, %25 : vector<8x32xf32>
    %cst_19 = arith.constant 0.000000e+00 : f32
    %27 = vector.broadcast %cst_19 : f32 to vector<8x32xf32>
    %28 = arith.maximumf %26, %27 : vector<8x32xf32>
    %29 = arith.truncf %28 : vector<8x32xf32> to vector<8x32xbf16>
    %c0_20 = arith.constant 0 : index
    %c0_21 = arith.constant 0 : index
    %c0_22 = arith.constant 0 : index
    %30 = vector.load %arg5[%c0_20, %c0_21, %c0_22] : memref<3x8x8xbf16, #tpu.memory_space<vmem>>, vector<1x8x8xbf16>
    %31 = vector.shape_cast %30 : vector<1x8x8xbf16> to vector<8x8xbf16>
    %cst_23 = arith.constant dense<0.000000e+00> : vector<8x32xf32>
    %32 = tpu.matmul %31, %29, %cst_23 {dimension_numbers = #tpu.dot_dimension_numbers<[1], [0], [0], [1], [0, 0, 1, 1], [], []>} : vector<8x8xbf16>, vector<8x32xbf16>, vector<8x32xf32> -> vector<8x32xf32>
    %c1_24 = arith.constant 1 : index
    %c0_25 = arith.constant 0 : index
    %c0_26 = arith.constant 0 : index
    %33 = vector.load %arg5[%c1_24, %c0_25, %c0_26] : memref<3x8x8xbf16, #tpu.memory_space<vmem>>, vector<1x8x8xbf16>
    %34 = vector.shape_cast %33 : vector<1x8x8xbf16> to vector<8x8xbf16>
    %cst_27 = arith.constant dense<0.000000e+00> : vector<8x32xf32>
    %35 = tpu.matmul %34, %29, %cst_27 {dimension_numbers = #tpu.dot_dimension_numbers<[1], [0], [0], [1], [0, 0, 1, 1], [], []>} : vector<8x8xbf16>, vector<8x32xbf16>, vector<8x32xf32> -> vector<8x32xf32>
    %c2_28 = arith.constant 2 : index
    %c0_29 = arith.constant 0 : index
    %c0_30 = arith.constant 0 : index
    %36 = vector.load %arg5[%c2_28, %c0_29, %c0_30] : memref<3x8x8xbf16, #tpu.memory_space<vmem>>, vector<1x8x8xbf16>
    %37 = vector.shape_cast %36 : vector<1x8x8xbf16> to vector<8x8xbf16>
    %cst_31 = arith.constant dense<0.000000e+00> : vector<8x32xf32>
    %38 = tpu.matmul %37, %29, %cst_31 {dimension_numbers = #tpu.dot_dimension_numbers<[1], [0], [0], [1], [0, 0, 1, 1], [], []>} : vector<8x8xbf16>, vector<8x32xbf16>, vector<8x32xf32> -> vector<8x32xf32>
    %c1_i32_32 = arith.constant 1 : i32
    %39 = tpu.dynamic_rotate %32 by %c1_i32_32 dim 1 : vector<8x32xf32>, i32 -> vector<8x32xf32>
    %40 = vector.broadcast %2 : vector<1x32xf32> to vector<8x32xf32>
    %41 = arith.mulf %39, %40 : vector<8x32xf32>
    %42 = arith.addf %41, %35 : vector<8x32xf32>
    %c31_i32_33 = arith.constant 31 : i32
    %43 = tpu.dynamic_rotate %38 by %c31_i32_33 dim 1 : vector<8x32xf32>, i32 -> vector<8x32xf32>
    %44 = vector.broadcast %3 : vector<1x32xf32> to vector<8x32xf32>
    %45 = arith.mulf %43, %44 : vector<8x32xf32>
    %46 = arith.addf %42, %45 : vector<8x32xf32>
    %c0_34 = arith.constant 0 : index
    %c0_35 = arith.constant 0 : index
    %47 = vector.load %arg6[%c0_34, %c0_35] : memref<8x1xf32, #tpu.memory_space<vmem>>, vector<8x1xf32>
    %48 = vector.broadcast %47 : vector<8x1xf32> to vector<8x32xf32>
    %49 = arith.mulf %46, %48 : vector<8x32xf32>
    %c0_36 = arith.constant 0 : index
    %c0_37 = arith.constant 0 : index
    %50 = vector.load %arg7[%c0_36, %c0_37] : memref<8x1xf32, #tpu.memory_space<vmem>>, vector<8x1xf32>
    %51 = vector.broadcast %50 : vector<8x1xf32> to vector<8x32xf32>
    %52 = arith.addf %49, %51 : vector<8x32xf32>
    %53 = math.absf %52 : vector<8x32xf32>
    %c0_38 = arith.constant 0 : index
    %c0_39 = arith.constant 0 : index
    %54 = vector.load %arg16[%c0_38, %c0_39] : memref<32x2xf32, #tpu.memory_space<vmem>>, vector<32x2xf32>
    %cst_40 = arith.constant dense<0.000000e+00> : vector<8x2xf32>
    %55 = tpu.matmul %53, %54, %cst_40 {dimension_numbers = #tpu.dot_dimension_numbers<[1], [0], [0], [1], [0, 0, 1, 1], [], []>} : vector<8x32xf32>, vector<32x2xf32>, vector<8x2xf32> -> vector<8x2xf32>
    %c0_41 = arith.constant 0 : index
    %c0_42 = arith.constant 0 : index
    %56 = vector.load %arg8[%c0_41, %c0_42] : memref<8x8xf32, #tpu.memory_space<vmem>>, vector<8x8xf32>
    %cst_43 = arith.constant dense<0.000000e+00> : vector<8x2xf32>
    %57 = tpu.matmul %56, %55, %cst_43 {dimension_numbers = #tpu.dot_dimension_numbers<[1], [0], [0], [1], [0, 0, 1, 1], [], []>} : vector<8x8xf32>, vector<8x2xf32>, vector<8x2xf32> -> vector<8x2xf32>
    %c0_44 = arith.constant 0 : index
    %c0_45 = arith.constant 0 : index
    %58 = vector.load %arg9[%c0_44, %c0_45] : memref<8x1xf32, #tpu.memory_space<vmem>>, vector<8x1xf32>
    %59 = vector.broadcast %58 : vector<8x1xf32> to vector<8x2xf32>
    %60 = arith.addf %57, %59 : vector<8x2xf32>
    %c0_46 = arith.constant 0 : index
    %c0_47 = arith.constant 0 : index
    %61 = vector.load %arg10[%c0_46, %c0_47] : memref<8x1xf32, #tpu.memory_space<vmem>>, vector<8x1xf32>
    %62 = vector.broadcast %61 : vector<8x1xf32> to vector<8x2xf32>
    %63 = arith.mulf %60, %62 : vector<8x2xf32>
    %c0_48 = arith.constant 0 : index
    %c0_49 = arith.constant 0 : index
    %64 = vector.load %arg11[%c0_48, %c0_49] : memref<8x1xf32, #tpu.memory_space<vmem>>, vector<8x1xf32>
    %65 = vector.broadcast %64 : vector<8x1xf32> to vector<8x2xf32>
    %66 = arith.addf %63, %65 : vector<8x2xf32>
    %cst_50 = arith.constant 0.000000e+00 : f32
    %67 = vector.broadcast %cst_50 : f32 to vector<8x2xf32>
    %68 = arith.maximumf %66, %67 : vector<8x2xf32>
    %c0_51 = arith.constant 0 : index
    %c0_52 = arith.constant 0 : index
    %69 = vector.load %arg12[%c0_51, %c0_52] : memref<8x8xf32, #tpu.memory_space<vmem>>, vector<8x8xf32>
    %cst_53 = arith.constant dense<0.000000e+00> : vector<8x2xf32>
    %70 = tpu.matmul %69, %68, %cst_53 {dimension_numbers = #tpu.dot_dimension_numbers<[1], [0], [0], [1], [0, 0, 1, 1], [], []>} : vector<8x8xf32>, vector<8x2xf32>, vector<8x2xf32> -> vector<8x2xf32>
    %c0_54 = arith.constant 0 : index
    %c0_55 = arith.constant 0 : index
    %71 = vector.load %arg13[%c0_54, %c0_55] : memref<8x1xf32, #tpu.memory_space<vmem>>, vector<8x1xf32>
    %72 = vector.broadcast %71 : vector<8x1xf32> to vector<8x2xf32>
    %73 = arith.addf %70, %72 : vector<8x2xf32>
    %74 = arith.negf %73 : vector<8x2xf32>
    %75 = math.exp %74 : vector<8x2xf32>
    %cst_56 = arith.constant 1.000000e+00 : f32
    %76 = vector.broadcast %cst_56 : f32 to vector<8x2xf32>
    %77 = arith.addf %76, %75 : vector<8x2xf32>
    %78 = arith.divf %76, %77 : vector<8x2xf32>
    %79 = arith.mulf %55, %78 : vector<8x2xf32>
    %c0_57 = arith.constant 0 : index
    %c0_58 = arith.constant 0 : index
    %80 = vector.load %arg17[%c0_57, %c0_58] : memref<2x32xf32, #tpu.memory_space<vmem>>, vector<2x32xf32>
    %cst_59 = arith.constant dense<0.000000e+00> : vector<8x32xf32>
    %81 = tpu.matmul %79, %80, %cst_59 {dimension_numbers = #tpu.dot_dimension_numbers<[1], [0], [0], [1], [0, 0, 1, 1], [], []>} : vector<8x2xf32>, vector<2x32xf32>, vector<8x32xf32> -> vector<8x32xf32>
    %82 = arith.subf %53, %81 : vector<8x32xf32>
    %cst_60 = arith.constant 0.000000e+00 : f32
    %83 = vector.broadcast %cst_60 : f32 to vector<8x32xf32>
    %84 = arith.maximumf %82, %83 : vector<8x32xf32>
    %cst_61 = arith.constant 0.000000e+00 : f32
    %85 = vector.broadcast %cst_61 : f32 to vector<8x32xf32>
    %86 = arith.cmpf oge, %52, %85 : vector<8x32xf32>
    %cst_62 = arith.constant 0.000000e+00 : f32
    %87 = vector.broadcast %cst_62 : f32 to vector<8x32xf32>
    %88 = arith.subf %87, %84 : vector<8x32xf32>
    %89 = arith.select %86, %84, %88 : vector<8x32xi1>, vector<8x32xf32>
    %c0_63 = arith.constant 0 : index
    %c0_64 = arith.constant 0 : index
    %90 = vector.load %arg18[%c0_63, %c0_64] : memref<8x4xbf16, #tpu.memory_space<vmem>>, vector<8x4xbf16>
    %cst_65 = arith.constant dense<0.000000e+00> : vector<8x32xf32>
    %91 = tpu.matmul %90, %1, %cst_65 {dimension_numbers = #tpu.dot_dimension_numbers<[1], [0], [0], [1], [0, 0, 1, 1], [], []>} : vector<8x4xbf16>, vector<4x32xbf16>, vector<8x32xf32> -> vector<8x32xf32>
    %c0_66 = arith.constant 0 : index
    %c0_67 = arith.constant 0 : index
    %92 = vector.load %arg19[%c0_66, %c0_67] : memref<8x1xf32, #tpu.memory_space<vmem>>, vector<8x1xf32>
    %93 = vector.broadcast %92 : vector<8x1xf32> to vector<8x32xf32>
    %94 = arith.mulf %91, %93 : vector<8x32xf32>
    %c0_68 = arith.constant 0 : index
    %c0_69 = arith.constant 0 : index
    %95 = vector.load %arg20[%c0_68, %c0_69] : memref<8x1xf32, #tpu.memory_space<vmem>>, vector<8x1xf32>
    %96 = vector.broadcast %95 : vector<8x1xf32> to vector<8x32xf32>
    %97 = arith.addf %94, %96 : vector<8x32xf32>
    %98 = arith.addf %89, %97 : vector<8x32xf32>
    %cst_70 = arith.constant 0.000000e+00 : f32
    %99 = vector.broadcast %cst_70 : f32 to vector<8x32xf32>
    %100 = arith.maximumf %98, %99 : vector<8x32xf32>
    %101 = arith.truncf %100 : vector<8x32xf32> to vector<8x32xbf16>
    %c0_71 = arith.constant 0 : index
    %c0_72 = arith.constant 0 : index
    %c0_73 = arith.constant 0 : index
    %102 = vector.load %arg21[%c0_71, %c0_72, %c0_73] : memref<1x8x32xbf16, #tpu.memory_space<vmem>>, vector<1x8x32xbf16>
    %103 = vector.shape_cast %102 : vector<1x8x32xbf16> to vector<8x32xbf16>
    %104 = vector.shape_cast %101 : vector<8x32xbf16> to vector<1x8x32xbf16>
    tpu.vector_store %arg21[%c0_71, %c0_72, %c0_73], %104 {strides = array<i32>} : memref<1x8x32xbf16, #tpu.memory_space<vmem>>, vector<1x8x32xbf16>,
    return
  }
  func.func @transform_0(%arg0: i32) -> (i32, i32, i32) {
    %c0_i32 = arith.constant 0 : i32
    %c0_i32_0 = arith.constant 0 : i32
    %c0_i32_1 = arith.constant 0 : i32
    return %arg0, %c0_i32, %c0_i32_0 : i32, i32, i32
  }
  func.func @transform_1(%arg0: i32) -> (i32, i32, i32) {
    %c0_i32 = arith.constant 0 : i32
    %c0_i32_0 = arith.constant 0 : i32
    %c0_i32_1 = arith.constant 0 : i32
    %c0_i32_2 = arith.constant 0 : i32
    return %c0_i32, %c0_i32_0, %c0_i32_1 : i32, i32, i32
  }
  func.func @transform_2(%arg0: i32) -> (i32, i32) {
    %c0_i32 = arith.constant 0 : i32
    %c0_i32_0 = arith.constant 0 : i32
    %c0_i32_1 = arith.constant 0 : i32
    return %c0_i32, %c0_i32_0 : i32, i32
  }
  func.func @transform_3(%arg0: i32) -> (i32, i32) {
    %c0_i32 = arith.constant 0 : i32
    %c0_i32_0 = arith.constant 0 : i32
    %c0_i32_1 = arith.constant 0 : i32
    return %c0_i32, %c0_i32_0 : i32, i32
  }
  func.func @transform_4(%arg0: i32) -> (i32, i32, i32) {
    %c0_i32 = arith.constant 0 : i32
    %c0_i32_0 = arith.constant 0 : i32
    %c0_i32_1 = arith.constant 0 : i32
    %c0_i32_2 = arith.constant 0 : i32
    return %c0_i32, %c0_i32_0, %c0_i32_1 : i32, i32, i32
  }
  func.func @transform_5(%arg0: i32) -> (i32, i32) {
    %c0_i32 = arith.constant 0 : i32
    %c0_i32_0 = arith.constant 0 : i32
    %c0_i32_1 = arith.constant 0 : i32
    return %c0_i32, %c0_i32_0 : i32, i32
  }
  func.func @transform_6(%arg0: i32) -> (i32, i32) {
    %c0_i32 = arith.constant 0 : i32
    %c0_i32_0 = arith.constant 0 : i32
    %c0_i32_1 = arith.constant 0 : i32
    return %c0_i32, %c0_i32_0 : i32, i32
  }
  func.func @transform_7(%arg0: i32) -> (i32, i32) {
    %c0_i32 = arith.constant 0 : i32
    %c0_i32_0 = arith.constant 0 : i32
    %c0_i32_1 = arith.constant 0 : i32
    return %c0_i32, %c0_i32_0 : i32, i32
  }
  func.func @transform_8(%arg0: i32) -> (i32, i32) {
    %c0_i32 = arith.constant 0 : i32
    %c0_i32_0 = arith.constant 0 : i32
    %c0_i32_1 = arith.constant 0 : i32
    return %c0_i32, %c0_i32_0 : i32, i32
  }
  func.func @transform_9(%arg0: i32) -> (i32, i32) {
    %c0_i32 = arith.constant 0 : i32
    %c0_i32_0 = arith.constant 0 : i32
    %c0_i32_1 = arith.constant 0 : i32
    return %c0_i32, %c0_i32_0 : i32, i32
  }
  func.func @transform_10(%arg0: i32) -> (i32, i32) {
    %c0_i32 = arith.constant 0 : i32
    %c0_i32_0 = arith.constant 0 : i32
    %c0_i32_1 = arith.constant 0 : i32
    return %c0_i32, %c0_i32_0 : i32, i32
  }
  func.func @transform_11(%arg0: i32) -> (i32, i32) {
    %c0_i32 = arith.constant 0 : i32
    %c0_i32_0 = arith.constant 0 : i32
    %c0_i32_1 = arith.constant 0 : i32
    return %c0_i32, %c0_i32_0 : i32, i32
  }
  func.func @transform_12(%arg0: i32) -> (i32, i32) {
    %c0_i32 = arith.constant 0 : i32
    %c0_i32_0 = arith.constant 0 : i32
    %c0_i32_1 = arith.constant 0 : i32
    return %c0_i32, %c0_i32_0 : i32, i32
  }
  func.func @transform_13(%arg0: i32) -> (i32, i32) {
    %c0_i32 = arith.constant 0 : i32
    %c0_i32_0 = arith.constant 0 : i32
    %c0_i32_1 = arith.constant 0 : i32
    return %c0_i32, %c0_i32_0 : i32, i32
  }
  func.func @transform_14(%arg0: i32) -> (i32, i32) {
    %c0_i32 = arith.constant 0 : i32
    %c0_i32_0 = arith.constant 0 : i32
    %c0_i32_1 = arith.constant 0 : i32
    return %c0_i32, %c0_i32_0 : i32, i32
  }
  func.func @transform_15(%arg0: i32) -> (i32, i32) {
    %c0_i32 = arith.constant 0 : i32
    %c0_i32_0 = arith.constant 0 : i32
    %c0_i32_1 = arith.constant 0 : i32
    return %c0_i32, %c0_i32_0 : i32, i32
  }
  func.func @transform_16(%arg0: i32) -> (i32, i32) {
    %c0_i32 = arith.constant 0 : i32
    %c0_i32_0 = arith.constant 0 : i32
    %c0_i32_1 = arith.constant 0 : i32
    return %c0_i32, %c0_i32_0 : i32, i32
  }
  func.func @transform_17(%arg0: i32) -> (i32, i32) {
    %c0_i32 = arith.constant 0 : i32
    %c0_i32_0 = arith.constant 0 : i32
    %c0_i32_1 = arith.constant 0 : i32
    return %c0_i32, %c0_i32_0 : i32, i32
  }
  func.func @transform_18(%arg0: i32) -> (i32, i32) {
    %c0_i32 = arith.constant 0 : i32
    %c0_i32_0 = arith.constant 0 : i32
    %c0_i32_1 = arith.constant 0 : i32
    return %c0_i32, %c0_i32_0 : i32, i32
  }
  func.func @transform_19(%arg0: i32) -> (i32, i32) {
    %c0_i32 = arith.constant 0 : i32
    %c0_i32_0 = arith.constant 0 : i32
    %c0_i32_1 = arith.constant 0 : i32
    return %c0_i32, %c0_i32_0 : i32, i32
  }
  func.func @transform_20(%arg0: i32) -> (i32, i32, i32) {
    %c0_i32 = arith.constant 0 : i32
    %c0_i32_0 = arith.constant 0 : i32
    %c0_i32_1 = arith.constant 0 : i32
    return %arg0, %c0_i32, %c0_i32_0 : i32, i32, i32
  }
}

</mosaic_0001>

<llo_original>
// kernel: basic_block_forward.1
$region0: #{basic_block_forward.1}
  #allocation0 [shape = 'u32[]', space=smem, size = 0x4, offset = 0x4, fixed_abs, tag = 'smem constant byte address 0x4 - core index']
  #allocation1 [shape = 'u32[144,128]{1,0:T(1,128)}', space=vmem, size = 0x12000, scoped, tag = 'internal scratch']
  %s0 = inlined_call_operand.vmem [shape: bf16[1,4,32], index: 0, kind: input, shape index: {}]
  %s1 = inlined_call_operand.vmem [shape: bf16[3,8,4], index: 1, kind: input, shape index: {}]
  %s2 = inlined_call_operand.vmem [shape: f32[8,1], index: 2, kind: input, shape index: {}]
  %s3 = inlined_call_operand.vmem [shape: f32[8,1], index: 3, kind: input, shape index: {}]
  %s4 = inlined_call_operand.vmem [shape: bf16[3,8,8], index: 4, kind: input, shape index: {}]
  %s5 = inlined_call_operand.vmem [shape: f32[8,1], index: 5, kind: input, shape index: {}]
  %s6 = inlined_call_operand.vmem [shape: f32[8,1], index: 6, kind: input, shape index: {}]
  %s7 = inlined_call_operand.vmem [shape: f32[8,8], index: 7, kind: input, shape index: {}]
  %s8 = inlined_call_operand.vmem [shape: f32[8,1], index: 8, kind: input, shape index: {}]
  %s9 = inlined_call_operand.vmem [shape: f32[8,1], index: 9, kind: input, shape index: {}]
  %s10 = inlined_call_operand.vmem [shape: f32[8,1], index: 10, kind: input, shape index: {}]
  %s11 = inlined_call_operand.vmem [shape: f32[8,8], index: 11, kind: input, shape index: {}]
  %s12 = inlined_call_operand.vmem [shape: f32[8,1], index: 12, kind: input, shape index: {}]
  %s13 = inlined_call_operand.vmem [shape: f32[1,32], index: 13, kind: input, shape index: {}]
  %s14 = inlined_call_operand.vmem [shape: f32[1,32], index: 14, kind: input, shape index: {}]
  %s15 = inlined_call_operand.vmem [shape: f32[32,2], index: 15, kind: input, shape index: {}]
  %s16 = inlined_call_operand.vmem [shape: f32[2,32], index: 16, kind: input, shape index: {}]
  %s17 = inlined_call_operand.vmem [shape: bf16[8,4], index: 17, kind: input, shape index: {}]
  %s18 = inlined_call_operand.vmem [shape: f32[8,1], index: 18, kind: input, shape index: {}]
  %s19 = inlined_call_operand.vmem [shape: f32[8,1], index: 19, kind: input, shape index: {}]
  %s20 = inlined_call_operand.vmem [shape: bf16[1,8,32], index: 20, kind: output, shape index: {}]
  %s21 = sld [smem:[#allocation0]]
  $region90: #{basic_block_forward.1} parent=0
    _
  %s23 = ssub.s32 1, %s21
  %s24 = scalar_select 0, %s23, %s21
  // Predicated region
  $region2: #{basic_block_forward.1} parent=0 // pred_check
    _
  $region3: #{basic_block_forward.1} parent=0 // pred_check_branch
    %26 = sbr.rel (0) target = $region5
  $region4: #{basic_block_forward.1} parent=0 // pred_region
    _
  $region5: #{basic_block_forward.1} parent=0 // pred_fallthru
    _
  // Predicated region
  $region6: #{basic_block_forward.1} parent=0 // pred_check
    _
  $region7: #{basic_block_forward.1} parent=0 // pred_check_branch
    %28 = sbr.rel (0) target = $region9
  $region8: #{basic_block_forward.1} parent=0 // pred_region
    _
  $region9: #{basic_block_forward.1} parent=0 // pred_fallthru
    _
  // Predicated region
  $region10: #{basic_block_forward.1} parent=0 // pred_check
    _
  $region11: #{basic_block_forward.1} parent=0 // pred_check_branch
    %30 = sbr.rel (0) target = $region13
  $region12: #{basic_block_forward.1} parent=0 // pred_region
    _
  $region13: #{basic_block_forward.1} parent=0 // pred_fallthru
    _
  // Predicated region
  $region14: #{basic_block_forward.1} parent=0 // pred_check
    _
  $region15: #{basic_block_forward.1} parent=0 // pred_check_branch
    %32 = sbr.rel (0) target = $region17
  $region16: #{basic_block_forward.1} parent=0 // pred_region
    _
  $region17: #{basic_block_forward.1} parent=0 // pred_fallthru
    _
  // Predicated region
  $region18: #{basic_block_forward.1} parent=0 // pred_check
    _
  $region19: #{basic_block_forward.1} parent=0 // pred_check_branch
    %34 = sbr.rel (0) target = $region21
  $region20: #{basic_block_forward.1} parent=0 // pred_region
    _
  $region21: #{basic_block_forward.1} parent=0 // pred_fallthru
    _
  // Predicated region
  $region22: #{basic_block_forward.1} parent=0 // pred_check
    _
  $region23: #{basic_block_forward.1} parent=0 // pred_check_branch
    %36 = sbr.rel (0) target = $region25
  $region24: #{basic_block_forward.1} parent=0 // pred_region
    _
  $region25: #{basic_block_forward.1} parent=0 // pred_fallthru
    _
  // Predicated region
  $region26: #{basic_block_forward.1} parent=0 // pred_check
    _
  $region27: #{basic_block_forward.1} parent=0 // pred_check_branch
    %38 = sbr.rel (0) target = $region29
  $region28: #{basic_block_forward.1} parent=0 // pred_region
    _
  $region29: #{basic_block_forward.1} parent=0 // pred_fallthru
    _
  // Predicated region
  $region30: #{basic_block_forward.1} parent=0 // pred_check
    _
  $region31: #{basic_block_forward.1} parent=0 // pred_check_branch
    %40 = sbr.rel (0) target = $region33
  $region32: #{basic_block_forward.1} parent=0 // pred_region
    _
  $region33: #{basic_block_forward.1} parent=0 // pred_fallthru
    _
  // Predicated region
  $region34: #{basic_block_forward.1} parent=0 // pred_check
    _
  $region35: #{basic_block_forward.1} parent=0 // pred_check_branch
    %42 = sbr.rel (0) target = $region37
  $region36: #{basic_block_forward.1} parent=0 // pred_region
    _
  $region37: #{basic_block_forward.1} parent=0 // pred_fallthru
    _
  // Predicated region
  $region38: #{basic_block_forward.1} parent=0 // pred_check
    _
  $region39: #{basic_block_forward.1} parent=0 // pred_check_branch
    %44 = sbr.rel (0) target = $region41
  $region40: #{basic_block_forward.1} parent=0 // pred_region
    _
  $region41: #{basic_block_forward.1} parent=0 // pred_fallthru
    _
  // Predicated region
  $region42: #{basic_block_forward.1} parent=0 // pred_check
    _
  $region43: #{basic_block_forward.1} parent=0 // pred_check_branch
    %46 = sbr.rel (0) target = $region45
  $region44: #{basic_block_forward.1} parent=0 // pred_region
    _
  $region45: #{basic_block_forward.1} parent=0 // pred_fallthru
    _
  // Predicated region
  $region46: #{basic_block_forward.1} parent=0 // pred_check
    _
  $region47: #{basic_block_forward.1} parent=0 // pred_check_branch
    %48 = sbr.rel (0) target = $region49
  $region48: #{basic_block_forward.1} parent=0 // pred_region
    _
  $region49: #{basic_block_forward.1} parent=0 // pred_fallthru
    _
  // Predicated region
  $region50: #{basic_block_forward.1} parent=0 // pred_check
    _
  $region51: #{basic_block_forward.1} parent=0 // pred_check_branch
    %50 = sbr.rel (0) target = $region53
  $region52: #{basic_block_forward.1} parent=0 // pred_region
    _
  $region53: #{basic_block_forward.1} parent=0 // pred_fallthru
    _
  // Predicated region
  $region54: #{basic_block_forward.1} parent=0 // pred_check
    _
  $region55: #{basic_block_forward.1} parent=0 // pred_check_branch
    %52 = sbr.rel (0) target = $region57
  $region56: #{basic_block_forward.1} parent=0 // pred_region
    _
  $region57: #{basic_block_forward.1} parent=0 // pred_fallthru
    _
  // Predicated region
  $region58: #{basic_block_forward.1} parent=0 // pred_check
    _
  $region59: #{basic_block_forward.1} parent=0 // pred_check_branch
    %54 = sbr.rel (0) target = $region61
  $region60: #{basic_block_forward.1} parent=0 // pred_region
    _
  $region61: #{basic_block_forward.1} parent=0 // pred_fallthru
    _
  // Predicated region
  $region62: #{basic_block_forward.1} parent=0 // pred_check
    _
  $region63: #{basic_block_forward.1} parent=0 // pred_check_branch
    %56 = sbr.rel (0) target = $region65
  $region64: #{basic_block_forward.1} parent=0 // pred_region
    _
  $region65: #{basic_block_forward.1} parent=0 // pred_fallthru
    _
  // Predicated region
  $region66: #{basic_block_forward.1} parent=0 // pred_check
    _
  $region67: #{basic_block_forward.1} parent=0 // pred_check_branch
    %58 = sbr.rel (0) target = $region69
  $region68: #{basic_block_forward.1} parent=0 // pred_region
    _
  $region69: #{basic_block_forward.1} parent=0 // pred_fallthru
    _
  // Predicated region
  $region70: #{basic_block_forward.1} parent=0 // pred_check
    _
  $region71: #{basic_block_forward.1} parent=0 // pred_check_branch
    %60 = sbr.rel (0) target = $region73
  $region72: #{basic_block_forward.1} parent=0 // pred_region
    _
  $region73: #{basic_block_forward.1} parent=0 // pred_fallthru
    _
  // Predicated region
  $region74: #{basic_block_forward.1} parent=0 // pred_check
    _
  $region75: #{basic_block_forward.1} parent=0 // pred_check_branch
    %62 = sbr.rel (0) target = $region77
  $region76: #{basic_block_forward.1} parent=0 // pred_region
    _
  $region77: #{basic_block_forward.1} parent=0 // pred_fallthru
    _
  // Predicated region
  $region78: #{basic_block_forward.1} parent=0 // pred_check
    _
  $region79: #{basic_block_forward.1} parent=0 // pred_check_branch
    %64 = sbr.rel (0) target = $region81
  $region80: #{basic_block_forward.1} parent=0 // pred_region
    _
  $region81: #{basic_block_forward.1} parent=0 // pred_fallthru
    _
  %v66 = vld [vmem:[%s0] sm:$0x3]
  %v67 = vld [vmem:[%s13] sm:$0x1]
  %v68 = vld [vmem:[%s14] sm:$0x1]
  %v69 = vld [vmem:[%s1] sm:$0xf]
  %vm70 = vcmask 31744
  %v72 = vsel %vm70, %v69, 0
  %vm74 = vcmask 1041408
  %v76 = vsel %vm74, %v66, 0
  %78 = vmatprep.subr.bf16.mxu0 0
  %79 = vmatpush1.bf16.msra.mxu0 %v76
  %80 = vmatprep.subr.bf16.mxu0 0
  %81 = vmatpush1.bf16.msra.mxu0 0
  %82 = vmatprep.subr.bf16.mxu0 0
  %83 = vmatpush1.bf16.msra.mxu0 0
  %84 = vmatprep.subr.bf16.mxu0 0
  %85 = vmatpush1.bf16.msra.mxu0 0
  %86 = vmatprep.subr.bf16.mxu0 0
  %87 = vmatpush1.bf16.msra.mxu0 0
  %88 = vmatprep.subr.bf16.mxu0 0
  %89 = vmatpush1.bf16.msra.mxu0 0
  %90 = vmatprep.subr.bf16.mxu0 0
  %91 = vmatpush1.bf16.msra.mxu0 0
  %92 = vmatprep.subr.bf16.mxu0 0
  %93 = vmatpush1.bf16.msra.mxu0 0
  %94 = vmatprep.subr.bf16.mxu0 0
  %95 = vmatpush1.bf16.msra.mxu0 0
  %96 = vmatprep.subr.bf16.mxu0 0
  %97 = vmatpush1.bf16.msra.mxu0 0
  %98 = vmatprep.subr.bf16.mxu0 0
  %99 = vmatpush1.bf16.msra.mxu0 0
  %100 = vmatprep.subr.bf16.mxu0 0
  %101 = vmatpush1.bf16.msra.mxu0 0
  %102 = vmatprep.subr.bf16.mxu0 0
  %103 = vmatpush1.bf16.msra.mxu0 0
  %104 = vmatprep.subr.bf16.mxu0 0
  %105 = vmatpush1.bf16.msra.mxu0 0
  %106 = vmatprep.subr.bf16.mxu0 0
  %107 = vmatpush1.bf16.msra.mxu0 0
  %108 = vmatprep.subr.bf16.mxu0 0
  %109 = vmatpush1.bf16.msra.mxu0 0
  %110 = vmatprep.mubr.bf16.mxu0 0
  %111 = vmatmul.mubr.bf16.gmra.mrb[0].mxu0 %v72
  %v112 = vpop.f32.mrb[0].mxu0
  %v113 = vadd.f32 0.0, %v112
  %v114 = vpop.f32.mrb[0].mxu0
  %v115 = vpop.f32.mrb[0].mxu0
  %v116 = vpop.f32.mrb[0].mxu0
  %117 = vdwg.mxu0
  %s118 = scalar_lea.vmem %s1, 4
  %v119 = vld [vmem:[%s118] sm:$0xf]
  %v121 = vsel %vm70, %v119, 0
  %123 = vmatprep.subr.bf16.mxu0 0
  %124 = vmatpush1.bf16.msra.mxu0 %v76
  %125 = vmatprep.subr.bf16.mxu0 0
  %126 = vmatpush1.bf16.msra.mxu0 0
  %127 = vmatprep.subr.bf16.mxu0 0
  %128 = vmatpush1.bf16.msra.mxu0 0
  %129 = vmatprep.subr.bf16.mxu0 0
  %130 = vmatpush1.bf16.msra.mxu0 0
  %131 = vmatprep.subr.bf16.mxu0 0
  %132 = vmatpush1.bf16.msra.mxu0 0
  %133 = vmatprep.subr.bf16.mxu0 0
  %134 = vmatpush1.bf16.msra.mxu0 0
  %135 = vmatprep.subr.bf16.mxu0 0
  %136 = vmatpush1.bf16.msra.mxu0 0
  %137 = vmatprep.subr.bf16.mxu0 0
  %138 = vmatpush1.bf16.msra.mxu0 0
  %139 = vmatprep.subr.bf16.mxu0 0
  %140 = vmatpush1.bf16.msra.mxu0 0
  %141 = vmatprep.subr.bf16.mxu0 0
  %142 = vmatpush1.bf16.msra.mxu0 0
  %143 = vmatprep.subr.bf16.mxu0 0
  %144 = vmatpush1.bf16.msra.mxu0 0
  %145 = vmatprep.subr.bf16.mxu0 0
  %146 = vmatpush1.bf16.msra.mxu0 0
  %147 = vmatprep.subr.bf16.mxu0 0
  %148 = vmatpush1.bf16.msra.mxu0 0
  %149 = vmatprep.subr.bf16.mxu0 0
  %150 = vmatpush1.bf16.msra.mxu0 0
  %151 = vmatprep.subr.bf16.mxu0 0
  %152 = vmatpush1.bf16.msra.mxu0 0
  %153 = vmatprep.subr.bf16.mxu0 0
  %154 = vmatpush1.bf16.msra.mxu0 0
  %155 = vmatprep.mubr.bf16.mxu0 0
  %156 = vmatmul.mubr.bf16.gmra.mrb[0].mxu0 %v121
  %v157 = vpop.f32.mrb[0].mxu0
  %v158 = vadd.f32 0.0, %v157
  %v159 = vpop.f32.mrb[0].mxu0
  %v160 = vpop.f32.mrb[0].mxu0
  %v161 = vpop.f32.mrb[0].mxu0
  %162 = vdwg.mxu0
  %s163 = scalar_lea.vmem %s1, 8
  %v164 = vld [vmem:[%s163] sm:$0xf]
  %v166 = vsel %vm70, %v164, 0
  %168 = vmatprep.subr.bf16.mxu0 0
  %169 = vmatpush1.bf16.msra.mxu0 %v76
  %170 = vmatprep.subr.bf16.mxu0 0
  %171 = vmatpush1.bf16.msra.mxu0 0
  %172 = vmatprep.subr.bf16.mxu0 0
  %173 = vmatpush1.bf16.msra.mxu0 0
  %174 = vmatprep.subr.bf16.mxu0 0
  %175 = vmatpush1.bf16.msra.mxu0 0
  %176 = vmatprep.subr.bf16.mxu0 0
  %177 = vmatpush1.bf16.msra.mxu0 0
  %178 = vmatprep.subr.bf16.mxu0 0
  %179 = vmatpush1.bf16.msra.mxu0 0
  %180 = vmatprep.subr.bf16.mxu0 0
  %181 = vmatpush1.bf16.msra.mxu0 0
  %182 = vmatprep.subr.bf16.mxu0 0
  %183 = vmatpush1.bf16.msra.mxu0 0
  %184 = vmatprep.subr.bf16.mxu0 0
  %185 = vmatpush1.bf16.msra.mxu0 0
  %186 = vmatprep.subr.bf16.mxu0 0
  %187 = vmatpush1.bf16.msra.mxu0 0
  %188 = vmatprep.subr.bf16.mxu0 0
  %189 = vmatpush1.bf16.msra.mxu0 0
  %190 = vmatprep.subr.bf16.mxu0 0
  %191 = vmatpush1.bf16.msra.mxu0 0
  %192 = vmatprep.subr.bf16.mxu0 0
  %193 = vmatpush1.bf16.msra.mxu0 0
  %194 = vmatprep.subr.bf16.mxu0 0
  %195 = vmatpush1.bf16.msra.mxu0 0
  %196 = vmatprep.subr.bf16.mxu0 0
  %197 = vmatpush1.bf16.msra.mxu0 0
  %198 = vmatprep.subr.bf16.mxu0 0
  %199 = vmatpush1.bf16.msra.mxu0 0
  %200 = vmatprep.mubr.bf16.mxu0 0
  %201 = vmatmul.mubr.bf16.gmra.mrb[0].mxu0 %v166
  %v202 = vpop.f32.mrb[0].mxu0
  %v203 = vadd.f32 0.0, %v202
  %v204 = vpop.f32.mrb[0].mxu0
  %v205 = vpop.f32.mrb[0].mxu0
  %v206 = vpop.f32.mrb[0].mxu0
  %207 = vdwg.mxu0
  %vm208 = vcmask 1047808
  %209 = vrot.lane.b32.xlu0 %v113, 32
  %v210 = vpop.permute.xlu0 %209
  %v211 = vsel %vm208, %v210, %v113
  %212 = vrot.lane.b32.xlu0 %v211, 32
  %v213 = vpop.permute.xlu0 %212
  %v214 = vsel %vm208, %v213, %v113
  %v216 = vlaneseq
  %v217 = vshrl.u32 %v216, 7
  %v218 = vsub.s32 0, %v217
  %v219 = vrot.slane %v67, %v218
  %220 = vrot.lane.b32.xlu0 %v219, 31
  %v221 = vpop.permute.xlu0 %220
  %v223 = vmul.f32 %v214, %v221
  %225 = vrot.lane.b32.xlu0 %v158, 31
  %v226 = vpop.permute.xlu0 %225
  %v228 = vadd.f32 %v223, %v226
  %229 = vrot.lane.b32.xlu0 %v203, 32
  %v230 = vpop.permute.xlu0 %229
  %v231 = vsel %vm208, %v230, %v203
  %232 = vrot.lane.b32.xlu0 %v231, 32
  %v233 = vpop.permute.xlu0 %232
  %v234 = vsel %vm208, %v233, %v203
  %v236 = vlaneseq
  %v237 = vshrl.u32 %v236, 7
  %v238 = vsub.s32 0, %v237
  %v239 = vrot.slane %v68, %v238
  %240 = vrot.lane.b32.xlu0 %v239, 1
  %v241 = vpop.permute.xlu0 %240
  %v243 = vmul.f32 %v234, %v241
  %245 = vrot.lane.b32.xlu0 %v243, 30
  %v246 = vpop.permute.xlu0 %245
  %v248 = vadd.f32 %v228, %v246
  %v249 = vld [vmem:[%s2] sm:$0xff]
  %251 = vset.pattern.permute.xlu0 0
  %252 = vperm.xlu0 %251, %v249
  %v253 = vpop.permute.xlu0 %252
  %v255 = vmul.f32 %v248, %v253
  %v256 = vld [vmem:[%s3] sm:$0xff]
  %258 = vset.pattern.permute.xlu0 0
  %259 = vperm.xlu0 %258, %v256
  %v260 = vpop.permute.xlu0 %259
  %v262 = vadd.f32 %v255, %v260
  %v263 = vmax.f32 %v262, 0.0
  %v264 = vpack.c.bf16 %v263, %v263
  %v265 = vld [vmem:[%s4] sm:$0xf]
  %267 = vrot.lane.b32.xlu0 %v264, 97
  %v268 = vpop.permute.xlu0 %267
  %vm269 = vcmask 64512
  %v271 = vsel %vm269, %v265, 0
  %vm273 = vcmask 1043456
  %v275 = vsel %vm273, %v268, 0
  %277 = vmatprep.subr.bf16.mxu0 0
  %278 = vmatpush1.bf16.msra.mxu0 %v275
  %279 = vmatprep.subr.bf16.mxu0 0
  %280 = vmatpush1.bf16.msra.mxu0 0
  %281 = vmatprep.subr.bf16.mxu0 0
  %282 = vmatpush1.bf16.msra.mxu0 0
  %283 = vmatprep.subr.bf16.mxu0 0
  %284 = vmatpush1.bf16.msra.mxu0 0
  %285 = vmatprep.subr.bf16.mxu0 0
  %286 = vmatpush1.bf16.msra.mxu0 0
  %287 = vmatprep.subr.bf16.mxu0 0
  %288 = vmatpush1.bf16.msra.mxu0 0
  %289 = vmatprep.subr.bf16.mxu0 0
  %290 = vmatpush1.bf16.msra.mxu0 0
  %291 = vmatprep.subr.bf16.mxu0 0
  %292 = vmatpush1.bf16.msra.mxu0 0
  %293 = vmatprep.subr.bf16.mxu0 0
  %294 = vmatpush1.bf16.msra.mxu0 0
  %295 = vmatprep.subr.bf16.mxu0 0
  %296 = vmatpush1.bf16.msra.mxu0 0
  %297 = vmatprep.subr.bf16.mxu0 0
  %298 = vmatpush1.bf16.msra.mxu0 0
  %299 = vmatprep.subr.bf16.mxu0 0
  %300 = vmatpush1.bf16.msra.mxu0 0
  %301 = vmatprep.subr.bf16.mxu0 0
  %302 = vmatpush1.bf16.msra.mxu0 0
  %303 = vmatprep.subr.bf16.mxu0 0
  %304 = vmatpush1.bf16.msra.mxu0 0
  %305 = vmatprep.subr.bf16.mxu0 0
  %306 = vmatpush1.bf16.msra.mxu0 0
  %307 = vmatprep.subr.bf16.mxu0 0
  %308 = vmatpush1.bf16.msra.mxu0 0
  %309 = vmatprep.mubr.bf16.mxu0 0
  %310 = vmatmul.mubr.bf16.gmra.mrb[0].mxu0 %v271
  %v311 = vpop.f32.mrb[0].mxu0
  %v312 = vadd.f32 0.0, %v311
  %v313 = vpop.f32.mrb[0].mxu0
  %v314 = vpop.f32.mrb[0].mxu0
  %v315 = vpop.f32.mrb[0].mxu0
  %316 = vdwg.mxu0
  %s317 = scalar_lea.vmem %s4, 4
  %v318 = vld [vmem:[%s317] sm:$0xf]
  %v320 = vsel %vm269, %v318, 0
  %322 = vmatprep.subr.bf16.mxu0 0
  %323 = vmatpush1.bf16.msra.mxu0 %v275
  %324 = vmatprep.subr.bf16.mxu0 0
  %325 = vmatpush1.bf16.msra.mxu0 0
  %326 = vmatprep.subr.bf16.mxu0 0
  %327 = vmatpush1.bf16.msra.mxu0 0
  %328 = vmatprep.subr.bf16.mxu0 0
  %329 = vmatpush1.bf16.msra.mxu0 0
  %330 = vmatprep.subr.bf16.mxu0 0
  %331 = vmatpush1.bf16.msra.mxu0 0
  %332 = vmatprep.subr.bf16.mxu0 0
  %333 = vmatpush1.bf16.msra.mxu0 0
  %334 = vmatprep.subr.bf16.mxu0 0
  %335 = vmatpush1.bf16.msra.mxu0 0
  %336 = vmatprep.subr.bf16.mxu0 0
  %337 = vmatpush1.bf16.msra.mxu0 0
  %338 = vmatprep.subr.bf16.mxu0 0
  %339 = vmatpush1.bf16.msra.mxu0 0
  %340 = vmatprep.subr.bf16.mxu0 0
  %341 = vmatpush1.bf16.msra.mxu0 0
  %342 = vmatprep.subr.bf16.mxu0 0
  %343 = vmatpush1.bf16.msra.mxu0 0
  %344 = vmatprep.subr.bf16.mxu0 0
  %345 = vmatpush1.bf16.msra.mxu0 0
  %346 = vmatprep.subr.bf16.mxu0 0
  %347 = vmatpush1.bf16.msra.mxu0 0
  %348 = vmatprep.subr.bf16.mxu0 0
  %349 = vmatpush1.bf16.msra.mxu0 0
  %350 = vmatprep.subr.bf16.mxu0 0
  %351 = vmatpush1.bf16.msra.mxu0 0
  %352 = vmatprep.subr.bf16.mxu0 0
  %353 = vmatpush1.bf16.msra.mxu0 0
  %354 = vmatprep.mubr.bf16.mxu0 0
  %355 = vmatmul.mubr.bf16.gmra.mrb[0].mxu0 %v320
  %v356 = vpop.f32.mrb[0].mxu0
  %v357 = vadd.f32 0.0, %v356
  %v358 = vpop.f32.mrb[0].mxu0
  %v359 = vpop.f32.mrb[0].mxu0
  %v360 = vpop.f32.mrb[0].mxu0
  %361 = vdwg.mxu0
  %s362 = scalar_lea.vmem %s4, 8
  %v363 = vld [vmem:[%s362] sm:$0xf]
  %v365 = vsel %vm269, %v363, 0
  %367 = vmatprep.subr.bf16.mxu0 0
  %368 = vmatpush1.bf16.msra.mxu0 %v275
  %369 = vmatprep.subr.bf16.mxu0 0
  %370 = vmatpush1.bf16.msra.mxu0 0
  %371 = vmatprep.subr.bf16.mxu0 0
  %372 = vmatpush1.bf16.msra.mxu0 0
  %373 = vmatprep.subr.bf16.mxu0 0
  %374 = vmatpush1.bf16.msra.mxu0 0
  %375 = vmatprep.subr.bf16.mxu0 0
  %376 = vmatpush1.bf16.msra.mxu0 0
  %377 = vmatprep.subr.bf16.mxu0 0
  %378 = vmatpush1.bf16.msra.mxu0 0
  %379 = vmatprep.subr.bf16.mxu0 0
  %380 = vmatpush1.bf16.msra.mxu0 0
  %381 = vmatprep.subr.bf16.mxu0 0
  %382 = vmatpush1.bf16.msra.mxu0 0
  %383 = vmatprep.subr.bf16.mxu0 0
  %384 = vmatpush1.bf16.msra.mxu0 0
  %385 = vmatprep.subr.bf16.mxu0 0
  %386 = vmatpush1.bf16.msra.mxu0 0
  %387 = vmatprep.subr.bf16.mxu0 0
  %388 = vmatpush1.bf16.msra.mxu0 0
  %389 = vmatprep.subr.bf16.mxu0 0
  %390 = vmatpush1.bf16.msra.mxu0 0
  %391 = vmatprep.subr.bf16.mxu0 0
  %392 = vmatpush1.bf16.msra.mxu0 0
  %393 = vmatprep.subr.bf16.mxu0 0
  %394 = vmatpush1.bf16.msra.mxu0 0
  %395 = vmatprep.subr.bf16.mxu0 0
  %396 = vmatpush1.bf16.msra.mxu0 0
  %397 = vmatprep.subr.bf16.mxu0 0
  %398 = vmatpush1.bf16.msra.mxu0 0
  %399 = vmatprep.mubr.bf16.mxu0 0
  %400 = vmatmul.mubr.bf16.gmra.mrb[0].mxu0 %v365
  %v401 = vpop.f32.mrb[0].mxu0
  %v402 = vadd.f32 0.0, %v401
  %v403 = vpop.f32.mrb[0].mxu0
  %v404 = vpop.f32.mrb[0].mxu0
  %v405 = vpop.f32.mrb[0].mxu0
  %406 = vdwg.mxu0
  %407 = vrot.lane.b32.xlu0 %v312, 32
  %v408 = vpop.permute.xlu0 %407
  %v409 = vsel %vm208, %v408, %v312
  %410 = vrot.lane.b32.xlu0 %v409, 32
  %v411 = vpop.permute.xlu0 %410
  %v412 = vsel %vm208, %v411, %v312
  %v413 = vmul.f32 %v412, %v221
  %415 = vrot.lane.b32.xlu0 %v357, 31
  %v416 = vpop.permute.xlu0 %415
  %v418 = vadd.f32 %v413, %v416
  %419 = vrot.lane.b32.xlu0 %v402, 32
  %v420 = vpop.permute.xlu0 %419
  %v421 = vsel %vm208, %v420, %v402
  %422 = vrot.lane.b32.xlu0 %v421, 32
  %v423 = vpop.permute.xlu0 %422
  %v424 = vsel %vm208, %v423, %v402
  %v425 = vmul.f32 %v424, %v241
  %427 = vrot.lane.b32.xlu0 %v425, 30
  %v428 = vpop.permute.xlu0 %427
  %v430 = vadd.f32 %v418, %v428
  %v431 = vld [vmem:[%s5] sm:$0xff]
  %433 = vset.pattern.permute.xlu0 0
  %434 = vperm.xlu0 %433, %v431
  %v435 = vpop.permute.xlu0 %434
  %v437 = vmul.f32 %v430, %v435
  %v438 = vld [vmem:[%s6] sm:$0xff]
  %440 = vset.pattern.permute.xlu0 0
  %441 = vperm.xlu0 %440, %v438
  %v442 = vpop.permute.xlu0 %441
  %v444 = vadd.f32 %v437, %v442
  %v445 = vand.u32 2147483647, %v444
  %v446 = vld [vmem:[%s15] sm:$0xff]
  %v447 = vld [vmem:[%s15 + $0x8] sm:$0xff]
  %v448 = vld [vmem:[%s15 + $0x10] sm:$0xff]
  %v449 = vld [vmem:[%s15 + $0x18] sm:$0xff]
  %451 = vrot.lane.b32.xlu0 %v445, 97
  %v452 = vpop.permute.xlu0 %451
  %vm453 = vcmask 261120
  %v454 = vsel %vm453, %v452, 0
  %456 = vmatprep.subr.mxu0 0.0
  %457 = vmatpush1.msra.mxu0 %v446
  %458 = vmatprep.subr.mxu0 0.0
  %459 = vmatpush1.msra.mxu0 %v447
  %460 = vmatprep.subr.mxu0 0.0
  %461 = vmatpush1.msra.mxu0 %v448
  %462 = vmatprep.subr.mxu0 0.0
  %463 = vmatpush1.msra.mxu0 %v449
  %464 = vmatprep.subr.mxu0 0.0
  %465 = vmatpush1.msra.mxu0 0.0
  %466 = vmatprep.subr.mxu0 0.0
  %467 = vmatpush1.msra.mxu0 0.0
  %468 = vmatprep.subr.mxu0 0.0
  %469 = vmatpush1.msra.mxu0 0.0
  %470 = vmatprep.subr.mxu0 0.0
  %471 = vmatpush1.msra.mxu0 0.0
  %472 = vmatprep.subr.mxu0 0.0
  %473 = vmatpush1.msra.mxu0 0.0
  %474 = vmatprep.subr.mxu0 0.0
  %475 = vmatpush1.msra.mxu0 0.0
  %476 = vmatprep.subr.mxu0 0.0
  %477 = vmatpush1.msra.mxu0 0.0
  %478 = vmatprep.subr.mxu0 0.0
  %479 = vmatpush1.msra.mxu0 0.0
  %480 = vmatprep.subr.mxu0 0.0
  %481 = vmatpush1.msra.mxu0 0.0
  %482 = vmatprep.subr.mxu0 0.0
  %483 = vmatpush1.msra.mxu0 0.0
  %484 = vmatprep.subr.mxu0 0.0
  %485 = vmatpush1.msra.mxu0 0.0
  %486 = vmatprep.subr.mxu0 0.0
  %487 = vmatpush1.msra.mxu0 0.0
  %488 = vmatprep.subr.mxu0 0.0
  %489 = vmatpush1.msra.mxu0 0.0
  %490 = vmatprep.subr.mxu0 0.0
  %491 = vmatpush1.msra.mxu0 0.0
  %492 = vmatprep.subr.mxu0 0.0
  %493 = vmatpush1.msra.mxu0 0.0
  %494 = vmatprep.subr.mxu0 0.0
  %495 = vmatpush1.msra.mxu0 0.0
  %496 = vmatprep.subr.mxu0 0.0
  %497 = vmatpush1.msra.mxu0 0.0
  %498 = vmatprep.subr.mxu0 0.0
  %499 = vmatpush1.msra.mxu0 0.0
  %500 = vmatprep.subr.mxu0 0.0
  %501 = vmatpush1.msra.mxu0 0.0
  %502 = vmatprep.subr.mxu0 0.0
  %503 = vmatpush1.msra.mxu0 0.0
  %504 = vmatprep.subr.mxu0 0.0
  %505 = vmatpush1.msra.mxu0 0.0
  %506 = vmatprep.subr.mxu0 0.0
  %507 = vmatpush1.msra.mxu0 0.0
  %508 = vmatprep.subr.mxu0 0.0
  %509 = vmatpush1.msra.mxu0 0.0
  %510 = vmatprep.subr.mxu0 0.0
  %511 = vmatpush1.msra.mxu0 0.0
  %512 = vmatprep.subr.mxu0 0.0
  %513 = vmatpush1.msra.mxu0 0.0
  %514 = vmatprep.subr.mxu0 0.0
  %515 = vmatpush1.msra.mxu0 0.0
  %516 = vmatprep.subr.mxu0 0.0
  %517 = vmatpush1.msra.mxu0 0.0
  %518 = vmatprep.subr.mxu0 0.0
  %519 = vmatpush1.msra.mxu0 0.0
  %520 = vmatprep.mubr.f32.mxu0 0.0
  %521 = vmatmul.mubr.f32.gmra.mrb[0].mxu0 %v454
  %v522 = vpop.f32.mrb[0].mxu0
  %v523 = vadd.f32 0.0, %v522
  %v524 = vpop.f32.mrb[0].mxu0
  %525 = vdwg.mxu0
  %v526 = vld [vmem:[%s7] sm:$0xff]
  %v527 = vld [vmem:[%s8] sm:$0xff]
  %529 = vset.pattern.permute.xlu0 0
  %530 = vperm.xlu0 %529, %v527
  %v531 = vpop.permute.xlu0 %530
  %v534 = vsel %vm269, %v526, 0
  %536 = vmatprep.subr.mxu0 0.0
  %537 = vmatpush1.msra.mxu0 %v523
  %538 = vmatprep.subr.mxu0 0.0
  %539 = vmatpush1.msra.mxu0 0.0
  %540 = vmatprep.subr.mxu0 0.0
  %541 = vmatpush1.msra.mxu0 0.0
  %542 = vmatprep.subr.mxu0 0.0
  %543 = vmatpush1.msra.mxu0 0.0
  %544 = vmatprep.subr.mxu0 0.0
  %545 = vmatpush1.msra.mxu0 0.0
  %546 = vmatprep.subr.mxu0 0.0
  %547 = vmatpush1.msra.mxu0 0.0
  %548 = vmatprep.subr.mxu0 0.0
  %549 = vmatpush1.msra.mxu0 0.0
  %550 = vmatprep.subr.mxu0 0.0
  %551 = vmatpush1.msra.mxu0 0.0
  %552 = vmatprep.subr.mxu0 0.0
  %553 = vmatpush1.msra.mxu0 0.0
  %554 = vmatprep.subr.mxu0 0.0
  %555 = vmatpush1.msra.mxu0 0.0
  %556 = vmatprep.subr.mxu0 0.0
  %557 = vmatpush1.msra.mxu0 0.0
  %558 = vmatprep.subr.mxu0 0.0
  %559 = vmatpush1.msra.mxu0 0.0
  %560 = vmatprep.subr.mxu0 0.0
  %561 = vmatpush1.msra.mxu0 0.0
  %562 = vmatprep.subr.mxu0 0.0
  %563 = vmatpush1.msra.mxu0 0.0
  %564 = vmatprep.subr.mxu0 0.0
  %565 = vmatpush1.msra.mxu0 0.0
  %566 = vmatprep.subr.mxu0 0.0
  %567 = vmatpush1.msra.mxu0 0.0
  %568 = vmatprep.subr.mxu0 0.0
  %569 = vmatpush1.msra.mxu0 0.0
  %570 = vmatprep.subr.mxu0 0.0
  %571 = vmatpush1.msra.mxu0 0.0
  %572 = vmatprep.subr.mxu0 0.0
  %573 = vmatpush1.msra.mxu0 0.0
  %574 = vmatprep.subr.mxu0 0.0
  %575 = vmatpush1.msra.mxu0 0.0
  %576 = vmatprep.subr.mxu0 0.0
  %577 = vmatpush1.msra.mxu0 0.0
  %578 = vmatprep.subr.mxu0 0.0
  %579 = vmatpush1.msra.mxu0 0.0
  %580 = vmatprep.subr.mxu0 0.0
  %581 = vmatpush1.msra.mxu0 0.0
  %582 = vmatprep.subr.mxu0 0.0
  %583 = vmatpush1.msra.mxu0 0.0
  %584 = vmatprep.subr.mxu0 0.0
  %585 = vmatpush1.msra.mxu0 0.0
  %586 = vmatprep.subr.mxu0 0.0
  %587 = vmatpush1.msra.mxu0 0.0
  %588 = vmatprep.subr.mxu0 0.0
  %589 = vmatpush1.msra.mxu0 0.0
  %590 = vmatprep.subr.mxu0 0.0
  %591 = vmatpush1.msra.mxu0 0.0
  %592 = vmatprep.subr.mxu0 0.0
  %593 = vmatpush1.msra.mxu0 0.0
  %594 = vmatprep.subr.mxu0 0.0
  %595 = vmatpush1.msra.mxu0 0.0
  %596 = vmatprep.subr.mxu0 0.0
  %597 = vmatpush1.msra.mxu0 0.0
  %598 = vmatprep.subr.mxu0 0.0
  %599 = vmatpush1.msra.mxu0 0.0
  %600 = vmatprep.mubr.f32.mxu0 0.0
  %601 = vmatmul.mubr.f32.gmra.mrb[0].mxu0 %v534
  %v602 = vpop.f32.mrb[0].mxu0
  %v603 = vadd.f32 %v531, %v602
  %v604 = vpop.f32.mrb[0].mxu0
  %605 = vdwg.mxu0
  %v606 = vld [vmem:[%s9] sm:$0xff]
  %608 = vset.pattern.permute.xlu0 0
  %609 = vperm.xlu0 %608, %v606
  %v610 = vpop.permute.xlu0 %609
  %v612 = vmul.f32 %v603, %v610
  %v613 = vld [vmem:[%s10] sm:$0xff]
  %615 = vset.pattern.permute.xlu0 0
  %616 = vperm.xlu0 %615, %v613
  %v617 = vpop.permute.xlu0 %616
  %v619 = vadd.f32 %v612, %v617
  %v620 = vmax.f32 %v619, 0.0
  %v621 = vld [vmem:[%s11] sm:$0xff]
  %v622 = vld [vmem:[%s12] sm:$0xff]
  %624 = vset.pattern.permute.xlu0 0
  %625 = vperm.xlu0 %624, %v622
  %v626 = vpop.permute.xlu0 %625
  %v629 = vsel %vm269, %v621, 0
  %631 = vmatprep.subr.mxu0 0.0
  %632 = vmatpush1.msra.mxu0 %v620
  %633 = vmatprep.subr.mxu0 0.0
  %634 = vmatpush1.msra.mxu0 0.0
  %635 = vmatprep.subr.mxu0 0.0
  %636 = vmatpush1.msra.mxu0 0.0
  %637 = vmatprep.subr.mxu0 0.0
  %638 = vmatpush1.msra.mxu0 0.0
  %639 = vmatprep.subr.mxu0 0.0
  %640 = vmatpush1.msra.mxu0 0.0
  %641 = vmatprep.subr.mxu0 0.0
  %642 = vmatpush1.msra.mxu0 0.0
  %643 = vmatprep.subr.mxu0 0.0
  %644 = vmatpush1.msra.mxu0 0.0
  %645 = vmatprep.subr.mxu0 0.0
  %646 = vmatpush1.msra.mxu0 0.0
  %647 = vmatprep.subr.mxu0 0.0
  %648 = vmatpush1.msra.mxu0 0.0
  %649 = vmatprep.subr.mxu0 0.0
  %650 = vmatpush1.msra.mxu0 0.0
  %651 = vmatprep.subr.mxu0 0.0
  %652 = vmatpush1.msra.mxu0 0.0
  %653 = vmatprep.subr.mxu0 0.0
  %654 = vmatpush1.msra.mxu0 0.0
  %655 = vmatprep.subr.mxu0 0.0
  %656 = vmatpush1.msra.mxu0 0.0
  %657 = vmatprep.subr.mxu0 0.0
  %658 = vmatpush1.msra.mxu0 0.0
  %659 = vmatprep.subr.mxu0 0.0
  %660 = vmatpush1.msra.mxu0 0.0
  %661 = vmatprep.subr.mxu0 0.0
  %662 = vmatpush1.msra.mxu0 0.0
  %663 = vmatprep.subr.mxu0 0.0
  %664 = vmatpush1.msra.mxu0 0.0
  %665 = vmatprep.subr.mxu0 0.0
  %666 = vmatpush1.msra.mxu0 0.0
  %667 = vmatprep.subr.mxu0 0.0
  %668 = vmatpush1.msra.mxu0 0.0
  %669 = vmatprep.subr.mxu0 0.0
  %670 = vmatpush1.msra.mxu0 0.0
  %671 = vmatprep.subr.mxu0 0.0
  %672 = vmatpush1.msra.mxu0 0.0
  %673 = vmatprep.subr.mxu0 0.0
  %674 = vmatpush1.msra.mxu0 0.0
  %675 = vmatprep.subr.mxu0 0.0
  %676 = vmatpush1.msra.mxu0 0.0
  %677 = vmatprep.subr.mxu0 0.0
  %678 = vmatpush1.msra.mxu0 0.0
  %679 = vmatprep.subr.mxu0 0.0
  %680 = vmatpush1.msra.mxu0 0.0
  %681 = vmatprep.subr.mxu0 0.0
  %682 = vmatpush1.msra.mxu0 0.0
  %683 = vmatprep.subr.mxu0 0.0
  %684 = vmatpush1.msra.mxu0 0.0
  %685 = vmatprep.subr.mxu0 0.0
  %686 = vmatpush1.msra.mxu0 0.0
  %687 = vmatprep.subr.mxu0 0.0
  %688 = vmatpush1.msra.mxu0 0.0
  %689 = vmatprep.subr.mxu0 0.0
  %690 = vmatpush1.msra.mxu0 0.0
  %691 = vmatprep.subr.mxu0 0.0
  %692 = vmatpush1.msra.mxu0 0.0
  %693 = vmatprep.subr.mxu0 0.0
  %694 = vmatpush1.msra.mxu0 0.0
  %695 = vmatprep.mubr.f32.mxu0 0.0
  %696 = vmatmul.mubr.f32.gmra.mrb[0].mxu0 %v629
  %v697 = vpop.f32.mrb[0].mxu0
  %v698 = vadd.f32 %v626, %v697
  %v699 = vpop.f32.mrb[0].mxu0
  %700 = vdwg.mxu0
  %v701 = vxor.u32 %v698, 2147483648
  %v702 = vmul.f32 %v701, 1.442695
  %v703 = vpow.pop %v702
  %v704 = vadd.f32 %v703, 1.0
  %v705 = vrcp.pop %v704
  %v706 = vmul.f32 1.0, %v705
  %v707 = vmul.f32 %v523, %v706
  %v708 = vld [vmem:[%s16] sm:$0x3]
  %vm709 = vcmask 15360
  %v711 = vsel %vm709, %v707, 0
  %v714 = vsel %vm74, %v708, 0
  %716 = vmatprep.subr.mxu0 0.0
  %717 = vmatpush1.msra.mxu0 %v714
  %718 = vmatprep.subr.mxu0 0.0
  %719 = vmatpush1.msra.mxu0 0.0
  %720 = vmatprep.subr.mxu0 0.0
  %721 = vmatpush1.msra.mxu0 0.0
  %722 = vmatprep.subr.mxu0 0.0
  %723 = vmatpush1.msra.mxu0 0.0
  %724 = vmatprep.subr.mxu0 0.0
  %725 = vmatpush1.msra.mxu0 0.0
  %726 = vmatprep.subr.mxu0 0.0
  %727 = vmatpush1.msra.mxu0 0.0
  %728 = vmatprep.subr.mxu0 0.0
  %729 = vmatpush1.msra.mxu0 0.0
  %730 = vmatprep.subr.mxu0 0.0
  %731 = vmatpush1.msra.mxu0 0.0
  %732 = vmatprep.subr.mxu0 0.0
  %733 = vmatpush1.msra.mxu0 0.0
  %734 = vmatprep.subr.mxu0 0.0
  %735 = vmatpush1.msra.mxu0 0.0
  %736 = vmatprep.subr.mxu0 0.0
  %737 = vmatpush1.msra.mxu0 0.0
  %738 = vmatprep.subr.mxu0 0.0
  %739 = vmatpush1.msra.mxu0 0.0
  %740 = vmatprep.subr.mxu0 0.0
  %741 = vmatpush1.msra.mxu0 0.0
  %742 = vmatprep.subr.mxu0 0.0
  %743 = vmatpush1.msra.mxu0 0.0
  %744 = vmatprep.subr.mxu0 0.0
  %745 = vmatpush1.msra.mxu0 0.0
  %746 = vmatprep.subr.mxu0 0.0
  %747 = vmatpush1.msra.mxu0 0.0
  %748 = vmatprep.subr.mxu0 0.0
  %749 = vmatpush1.msra.mxu0 0.0
  %750 = vmatprep.subr.mxu0 0.0
  %751 = vmatpush1.msra.mxu0 0.0
  %752 = vmatprep.subr.mxu0 0.0
  %753 = vmatpush1.msra.mxu0 0.0
  %754 = vmatprep.subr.mxu0 0.0
  %755 = vmatpush1.msra.mxu0 0.0
  %756 = vmatprep.subr.mxu0 0.0
  %757 = vmatpush1.msra.mxu0 0.0
  %758 = vmatprep.subr.mxu0 0.0
  %759 = vmatpush1.msra.mxu0 0.0
  %760 = vmatprep.subr.mxu0 0.0
  %761 = vmatpush1.msra.mxu0 0.0
  %762 = vmatprep.subr.mxu0 0.0
  %763 = vmatpush1.msra.mxu0 0.0
  %764 = vmatprep.subr.mxu0 0.0
  %765 = vmatpush1.msra.mxu0 0.0
  %766 = vmatprep.subr.mxu0 0.0
  %767 = vmatpush1.msra.mxu0 0.0
  %768 = vmatprep.subr.mxu0 0.0
  %769 = vmatpush1.msra.mxu0 0.0
  %770 = vmatprep.subr.mxu0 0.0
  %771 = vmatpush1.msra.mxu0 0.0
  %772 = vmatprep.subr.mxu0 0.0
  %773 = vmatpush1.msra.mxu0 0.0
  %774 = vmatprep.subr.mxu0 0.0
  %775 = vmatpush1.msra.mxu0 0.0
  %776 = vmatprep.subr.mxu0 0.0
  %777 = vmatpush1.msra.mxu0 0.0
  %778 = vmatprep.subr.mxu0 0.0
  %779 = vmatpush1.msra.mxu0 0.0
  %780 = vmatprep.mubr.f32.mxu0 0.0
  %781 = vmatmul.mubr.f32.gmra.mrb[0].mxu0 %v711
  %v782 = vpop.f32.mrb[0].mxu0
  %v783 = vadd.f32 0.0, %v782
  %v784 = vpop.f32.mrb[0].mxu0
  %785 = vdwg.mxu0
  %787 = vrot.lane.b32.xlu0 %v783, 31
  %v788 = vpop.permute.xlu0 %787
  %v790 = vsub.f32 %v445, %v788
  %v791 = vmax.f32 %v790, 0.0
  %vm792 = vcmp.ge.f32.partialorder %v444, 0.0
  %v793 = vsub.f32 0.0, %v791
  %v794 = vsel %vm792, %v791, %v793
  %v795 = vld [vmem:[%s17] sm:$0xf]
  %v797 = vsel %vm70, %v795, 0
  %799 = vmatprep.subr.bf16.mxu0 0
  %800 = vmatpush1.bf16.msra.mxu0 %v76
  %801 = vmatprep.subr.bf16.mxu0 0
  %802 = vmatpush1.bf16.msra.mxu0 0
  %803 = vmatprep.subr.bf16.mxu0 0
  %804 = vmatpush1.bf16.msra.mxu0 0
  %805 = vmatprep.subr.bf16.mxu0 0
  %806 = vmatpush1.bf16.msra.mxu0 0
  %807 = vmatprep.subr.bf16.mxu0 0
  %808 = vmatpush1.bf16.msra.mxu0 0
  %809 = vmatprep.subr.bf16.mxu0 0
  %810 = vmatpush1.bf16.msra.mxu0 0
  %811 = vmatprep.subr.bf16.mxu0 0
  %812 = vmatpush1.bf16.msra.mxu0 0
  %813 = vmatprep.subr.bf16.mxu0 0
  %814 = vmatpush1.bf16.msra.mxu0 0
  %815 = vmatprep.subr.bf16.mxu0 0
  %816 = vmatpush1.bf16.msra.mxu0 0
  %817 = vmatprep.subr.bf16.mxu0 0
  %818 = vmatpush1.bf16.msra.mxu0 0
  %819 = vmatprep.subr.bf16.mxu0 0
  %820 = vmatpush1.bf16.msra.mxu0 0
  %821 = vmatprep.subr.bf16.mxu0 0
  %822 = vmatpush1.bf16.msra.mxu0 0
  %823 = vmatprep.subr.bf16.mxu0 0
  %824 = vmatpush1.bf16.msra.mxu0 0
  %825 = vmatprep.subr.bf16.mxu0 0
  %826 = vmatpush1.bf16.msra.mxu0 0
  %827 = vmatprep.subr.bf16.mxu0 0
  %828 = vmatpush1.bf16.msra.mxu0 0
  %829 = vmatprep.subr.bf16.mxu0 0
  %830 = vmatpush1.bf16.msra.mxu0 0
  %831 = vmatprep.mubr.bf16.mxu0 0
  %832 = vmatmul.mubr.bf16.gmra.mrb[0].mxu0 %v797
  %v833 = vpop.f32.mrb[0].mxu0
  %v834 = vadd.f32 0.0, %v833
  %v835 = vpop.f32.mrb[0].mxu0
  %v836 = vpop.f32.mrb[0].mxu0
  %v837 = vpop.f32.mrb[0].mxu0
  %838 = vdwg.mxu0
  %v839 = vld [vmem:[%s18] sm:$0xff]
  %841 = vset.pattern.permute.xlu0 0
  %842 = vperm.xlu0 %841, %v839
  %v843 = vpop.permute.xlu0 %842
  %v845 = vmul.f32 %v834, %v843
  %v846 = vld [vmem:[%s19] sm:$0xff]
  %848 = vset.pattern.permute.xlu0 0
  %849 = vperm.xlu0 %848, %v846
  %v850 = vpop.permute.xlu0 %849
  %v852 = vadd.f32 %v845, %v850
  %854 = vrot.lane.b32.xlu0 %v852, 31
  %v855 = vpop.permute.xlu0 %854
  %v857 = vadd.f32 %v794, %v855
  %v858 = vmax.f32 %v857, 0.0
  %v859 = vpack.c.bf16 %v858, %v858
  %v861 = vunpack.c.l.b16 %v859
  %v862 = vpack.c.b16 %v861, %v861
  %863 = vrot.lane.b32.xlu0 %v862, 97
  %v864 = vpop.permute.xlu0 %863
  %vm866 = vcmask 257024
  %867 = vst.msk [vmem:[%s20] sm:$0xf] %vm866, %v864
  // Predicated region
  $region82: #{basic_block_forward.1} parent=0 // pred_check
    _
  $region83: #{basic_block_forward.1} parent=0 // pred_check_branch
    %869 = sbr.rel (0) target = $region85
  $region84: #{basic_block_forward.1} parent=0 // pred_region
    _
  $region85: #{basic_block_forward.1} parent=0 // pred_fallthru
    _
  // Predicated region
  $region86: #{basic_block_forward.1} parent=0 // pred_check
    _
  $region87: #{basic_block_forward.1} parent=0 // pred_check_branch
    %871 = sbr.rel (0) target = $region89
  $region88: #{basic_block_forward.1} parent=0 // pred_region
    _
  $region89: #{basic_block_forward.1} parent=0 // pred_fallthru
    _

// kernel: basic_block_forward.1
$region0: #{basic_block_forward.1}
  #allocation0 [shape = 'u32[]', space=smem, size = 0x4, offset = 0x4, fixed_abs, tag = 'smem constant byte address 0x4 - core index']
  #allocation1 [shape = 'u32[144,128]{1,0:T(1,128)}', space=vmem, size = 0x12000, scoped, tag = 'internal scratch']
  %s0 = inlined_call_operand.vmem [shape: bf16[1,4,32], index: 0, kind: input, shape index: {}]
  %s1 = inlined_call_operand.vmem [shape: bf16[3,8,4], index: 1, kind: input, shape index: {}]
  %s2 = inlined_call_operand.vmem [shape: f32[8,1], index: 2, kind: input, shape index: {}]
  %s3 = inlined_call_operand.vmem [shape: f32[8,1], index: 3, kind: input, shape index: {}]
  %s4 = inlined_call_operand.vmem [shape: bf16[3,8,8], index: 4, kind: input, shape index: {}]
  %s5 = inlined_call_operand.vmem [shape: f32[8,1], index: 5, kind: input, shape index: {}]
  %s6 = inlined_call_operand.vmem [shape: f32[8,1], index: 6, kind: input, shape index: {}]
  %s7 = inlined_call_operand.vmem [shape: f32[8,8], index: 7, kind: input, shape index: {}]
  %s8 = inlined_call_operand.vmem [shape: f32[8,1], index: 8, kind: input, shape index: {}]
  %s9 = inlined_call_operand.vmem [shape: f32[8,1], index: 9, kind: input, shape index: {}]
  %s10 = inlined_call_operand.vmem [shape: f32[8,1], index: 10, kind: input, shape index: {}]
  %s11 = inlined_call_operand.vmem [shape: f32[8,8], index: 11, kind: input, shape index: {}]
  %s12 = inlined_call_operand.vmem [shape: f32[8,1], index: 12, kind: input, shape index: {}]
  %s13 = inlined_call_operand.vmem [shape: f32[1,32], index: 13, kind: input, shape index: {}]
  %s14 = inlined_call_operand.vmem [shape: f32[1,32], index: 14, kind: input, shape index: {}]
  %s15 = inlined_call_operand.vmem [shape: f32[32,2], index: 15, kind: input, shape index: {}]
  %s16 = inlined_call_operand.vmem [shape: f32[2,32], index: 16, kind: input, shape index: {}]
  %s17 = inlined_call_operand.vmem [shape: bf16[8,4], index: 17, kind: input, shape index: {}]
  %s18 = inlined_call_operand.vmem [shape: f32[8,1], index: 18, kind: input, shape index: {}]
  %s19 = inlined_call_operand.vmem [shape: f32[8,1], index: 19, kind: input, shape index: {}]
  %s20 = inlined_call_operand.vmem [shape: bf16[1,8,32], index: 20, kind: output, shape index: {}]
  %s21 = sld [smem:[#allocation0]]
  $region90: #{basic_block_forward.1} parent=0
    _
  %s23 = ssub.s32 1, %s21
  %s24 = scalar_select 0, %s23, %s21
  // Predicated region
  $region2: #{basic_block_forward.1} parent=0 // pred_check
    _
  $region3: #{basic_block_forward.1} parent=0 // pred_check_branch
    %26 = sbr.rel (0) target = $region5
  $region4: #{basic_block_forward.1} parent=0 // pred_region
    _
  $region5: #{basic_block_forward.1} parent=0 // pred_fallthru
    _
  // Predicated region
  $region6: #{basic_block_forward.1} parent=0 // pred_check
    _
  $region7: #{basic_block_forward.1} parent=0 // pred_check_branch
    %28 = sbr.rel (0) target = $region9
  $region8: #{basic_block_forward.1} parent=0 // pred_region
    _
  $region9: #{basic_block_forward.1} parent=0 // pred_fallthru
    _
  // Predicated region
  $region10: #{basic_block_forward.1} parent=0 // pred_check
    _
  $region11: #{basic_block_forward.1} parent=0 // pred_check_branch
    %30 = sbr.rel (0) target = $region13
  $region12: #{basic_block_forward.1} parent=0 // pred_region
    _
  $region13: #{basic_block_forward.1} parent=0 // pred_fallthru
    _
  // Predicated region
  $region14: #{basic_block_forward.1} parent=0 // pred_check
    _
  $region15: #{basic_block_forward.1} parent=0 // pred_check_branch
    %32 = sbr.rel (0) target = $region17
  $region16: #{basic_block_forward.1} parent=0 // pred_region
    _
  $region17: #{basic_block_forward.1} parent=0 // pred_fallthru
    _
  // Predicated region
  $region18: #{basic_block_forward.1} parent=0 // pred_check
    _
  $region19: #{basic_block_forward.1} parent=0 // pred_check_branch
    %34 = sbr.rel (0) target = $region21
  $region20: #{basic_block_forward.1} parent=0 // pred_region
    _
  $region21: #{basic_block_forward.1} parent=0 // pred_fallthru
    _
  // Predicated region
  $region22: #{basic_block_forward.1} parent=0 // pred_check
    _
  $region23: #{basic_block_forward.1} parent=0 // pred_check_branch
    %36 = sbr.rel (0) target = $region25
  $region24: #{basic_block_forward.1} parent=0 // pred_region
    _
  $region25: #{basic_block_forward.1} parent=0 // pred_fallthru
    _
  // Predicated region
  $region26: #{basic_block_forward.1} parent=0 // pred_check
    _
  $region27: #{basic_block_forward.1} parent=0 // pred_check_branch
    %38 = sbr.rel (0) target = $region29
  $region28: #{basic_block_forward.1} parent=0 // pred_region
    _
  $region29: #{basic_block_forward.1} parent=0 // pred_fallthru
    _
  // Predicated region
  $region30: #{basic_block_forward.1} parent=0 // pred_check
    _
  $region31: #{basic_block_forward.1} parent=0 // pred_check_branch
    %40 = sbr.rel (0) target = $region33
  $region32: #{basic_block_forward.1} parent=0 // pred_region
    _
  $region33: #{basic_block_forward.1} parent=0 // pred_fallthru
    _
  // Predicated region
  $region34: #{basic_block_forward.1} parent=0 // pred_check
    _
  $region35: #{basic_block_forward.1} parent=0 // pred_check_branch
    %42 = sbr.rel (0) target = $region37
  $region36: #{basic_block_forward.1} parent=0 // pred_region
    _
  $region37: #{basic_block_forward.1} parent=0 // pred_fallthru
    _
  // Predicated region
  $region38: #{basic_block_forward.1} parent=0 // pred_check
    _
  $region39: #{basic_block_forward.1} parent=0 // pred_check_branch
    %44 = sbr.rel (0) target = $region41
  $region40: #{basic_block_forward.1} parent=0 // pred_region
    _
  $region41: #{basic_block_forward.1} parent=0 // pred_fallthru
    _
  // Predicated region
  $region42: #{basic_block_forward.1} parent=0 // pred_check
    _
  $region43: #{basic_block_forward.1} parent=0 // pred_check_branch
    %46 = sbr.rel (0) target = $region45
  $region44: #{basic_block_forward.1} parent=0 // pred_region
    _
  $region45: #{basic_block_forward.1} parent=0 // pred_fallthru
    _
  // Predicated region
  $region46: #{basic_block_forward.1} parent=0 // pred_check
    _
  $region47: #{basic_block_forward.1} parent=0 // pred_check_branch
    %48 = sbr.rel (0) target = $region49
  $region48: #{basic_block_forward.1} parent=0 // pred_region
    _
  $region49: #{basic_block_forward.1} parent=0 // pred_fallthru
    _
  // Predicated region
  $region50: #{basic_block_forward.1} parent=0 // pred_check
    _
  $region51: #{basic_block_forward.1} parent=0 // pred_check_branch
    %50 = sbr.rel (0) target = $region53
  $region52: #{basic_block_forward.1} parent=0 // pred_region
    _
  $region53: #{basic_block_forward.1} parent=0 // pred_fallthru
    _
  // Predicated region
  $region54: #{basic_block_forward.1} parent=0 // pred_check
    _
  $region55: #{basic_block_forward.1} parent=0 // pred_check_branch
    %52 = sbr.rel (0) target = $region57
  $region56: #{basic_block_forward.1} parent=0 // pred_region
    _
  $region57: #{basic_block_forward.1} parent=0 // pred_fallthru
    _
  // Predicated region
  $region58: #{basic_block_forward.1} parent=0 // pred_check
    _
  $region59: #{basic_block_forward.1} parent=0 // pred_check_branch
    %54 = sbr.rel (0) target = $region61
  $region60: #{basic_block_forward.1} parent=0 // pred_region
    _
  $region61: #{basic_block_forward.1} parent=0 // pred_fallthru
    _
  // Predicated region
  $region62: #{basic_block_forward.1} parent=0 // pred_check
    _
  $region63: #{basic_block_forward.1} parent=0 // pred_check_branch
    %56 = sbr.rel (0) target = $region65
  $region64: #{basic_block_forward.1} parent=0 // pred_region
    _
  $region65: #{basic_block_forward.1} parent=0 // pred_fallthru
    _
  // Predicated region
  $region66: #{basic_block_forward.1} parent=0 // pred_check
    _
  $region67: #{basic_block_forward.1} parent=0 // pred_check_branch
    %58 = sbr.rel (0) target = $region69
  $region68: #{basic_block_forward.1} parent=0 // pred_region
    _
  $region69: #{basic_block_forward.1} parent=0 // pred_fallthru
    _
  // Predicated region
  $region70: #{basic_block_forward.1} parent=0 // pred_check
    _
  $region71: #{basic_block_forward.1} parent=0 // pred_check_branch
    %60 = sbr.rel (0) target = $region73
  $region72: #{basic_block_forward.1} parent=0 // pred_region
    _
  $region73: #{basic_block_forward.1} parent=0 // pred_fallthru
    _
  // Predicated region
  $region74: #{basic_block_forward.1} parent=0 // pred_check
    _
  $region75: #{basic_block_forward.1} parent=0 // pred_check_branch
    %62 = sbr.rel (0) target = $region77
  $region76: #{basic_block_forward.1} parent=0 // pred_region
    _
  $region77: #{basic_block_forward.1} parent=0 // pred_fallthru
    _
  // Predicated region
  $region78: #{basic_block_forward.1} parent=0 // pred_check
    _
  $region79: #{basic_block_forward.1} parent=0 // pred_check_branch
    %64 = sbr.rel (0) target = $region81
  $region80: #{basic_block_forward.1} parent=0 // pred_region
    _
  $region81: #{basic_block_forward.1} parent=0 // pred_fallthru
    _
  %v66 = vld [vmem:[%s0] sm:$0x3]
  %v67 = vld [vmem:[%s13] sm:$0x1]
  %v68 = vld [vmem:[%s14] sm:$0x1]
  %v69 = vld [vmem:[%s1] sm:$0xf]
  %vm70 = vcmask 31744
  %v72 = vsel %vm70, %v69, 0
  %vm74 = vcmask 1041408
  %v76 = vsel %vm74, %v66, 0
  %78 = vmatprep.subr.bf16.mxu0 0
  %79 = vmatpush1.bf16.msra.mxu0 %v76
  %80 = vmatprep.subr.bf16.mxu0 0
  %81 = vmatpush1.bf16.msra.mxu0 0
  %82 = vmatprep.subr.bf16.mxu0 0
  %83 = vmatpush1.bf16.msra.mxu0 0
  %84 = vmatprep.subr.bf16.mxu0 0
  %85 = vmatpush1.bf16.msra.mxu0 0
  %86 = vmatprep.subr.bf16.mxu0 0
  %87 = vmatpush1.bf16.msra.mxu0 0
  %88 = vmatprep.subr.bf16.mxu0 0
  %89 = vmatpush1.bf16.msra.mxu0 0
  %90 = vmatprep.subr.bf16.mxu0 0
  %91 = vmatpush1.bf16.msra.mxu0 0
  %92 = vmatprep.subr.bf16.mxu0 0
  %93 = vmatpush1.bf16.msra.mxu0 0
  %94 = vmatprep.subr.bf16.mxu0 0
  %95 = vmatpush1.bf16.msra.mxu0 0
  %96 = vmatprep.subr.bf16.mxu0 0
  %97 = vmatpush1.bf16.msra.mxu0 0
  %98 = vmatprep.subr.bf16.mxu0 0
  %99 = vmatpush1.bf16.msra.mxu0 0
  %100 = vmatprep.subr.bf16.mxu0 0
  %101 = vmatpush1.bf16.msra.mxu0 0
  %102 = vmatprep.subr.bf16.mxu0 0
  %103 = vmatpush1.bf16.msra.mxu0 0
  %104 = vmatprep.subr.bf16.mxu0 0
  %105 = vmatpush1.bf16.msra.mxu0 0
  %106 = vmatprep.subr.bf16.mxu0 0
  %107 = vmatpush1.bf16.msra.mxu0 0
  %108 = vmatprep.subr.bf16.mxu0 0
  %109 = vmatpush1.bf16.msra.mxu0 0
  %110 = vmatprep.mubr.bf16.mxu0 0
  %111 = vmatmul.mubr.bf16.gmra.mrb[0].mxu0 %v72
  %v112 = vpop.f32.mrb[0].mxu0
  %v113 = vadd.f32 0.0, %v112
  %v114 = vpop.f32.mrb[0].mxu0
  %v115 = vpop.f32.mrb[0].mxu0
  %v116 = vpop.f32.mrb[0].mxu0
  %117 = vdwg.mxu0
  %s118 = scalar_lea.vmem %s1, 4
  %v119 = vld [vmem:[%s118] sm:$0xf]
  %v121 = vsel %vm70, %v119, 0
  %123 = vmatprep.subr.bf16.mxu0 0
  %124 = vmatpush1.bf16.msra.mxu0 %v76
  %125 = vmatprep.subr.bf16.mxu0 0
  %126 = vmatpush1.bf16.msra.mxu0 0
  %127 = vmatprep.subr.bf16.mxu0 0
  %128 = vmatpush1.bf16.msra.mxu0 0
  %129 = vmatprep.subr.bf16.mxu0 0
  %130 = vmatpush1.bf16.msra.mxu0 0
  %131 = vmatprep.subr.bf16.mxu0 0
  %132 = vmatpush1.bf16.msra.mxu0 0
  %133 = vmatprep.subr.bf16.mxu0 0
  %134 = vmatpush1.bf16.msra.mxu0 0
  %135 = vmatprep.subr.bf16.mxu0 0
  %136 = vmatpush1.bf16.msra.mxu0 0
  %137 = vmatprep.subr.bf16.mxu0 0
  %138 = vmatpush1.bf16.msra.mxu0 0
  %139 = vmatprep.subr.bf16.mxu0 0
  %140 = vmatpush1.bf16.msra.mxu0 0
  %141 = vmatprep.subr.bf16.mxu0 0
  %142 = vmatpush1.bf16.msra.mxu0 0
  %143 = vmatprep.subr.bf16.mxu0 0
  %144 = vmatpush1.bf16.msra.mxu0 0
  %145 = vmatprep.subr.bf16.mxu0 0
  %146 = vmatpush1.bf16.msra.mxu0 0
  %147 = vmatprep.subr.bf16.mxu0 0
  %148 = vmatpush1.bf16.msra.mxu0 0
  %149 = vmatprep.subr.bf16.mxu0 0
  %150 = vmatpush1.bf16.msra.mxu0 0
  %151 = vmatprep.subr.bf16.mxu0 0
  %152 = vmatpush1.bf16.msra.mxu0 0
  %153 = vmatprep.subr.bf16.mxu0 0
  %154 = vmatpush1.bf16.msra.mxu0 0
  %155 = vmatprep.mubr.bf16.mxu0 0
  %156 = vmatmul.mubr.bf16.gmra.mrb[0].mxu0 %v121
  %v157 = vpop.f32.mrb[0].mxu0
  %v158 = vadd.f32 0.0, %v157
  %v159 = vpop.f32.mrb[0].mxu0
  %v160 = vpop.f32.mrb[0].mxu0
  %v161 = vpop.f32.mrb[0].mxu0
  %162 = vdwg.mxu0
  %s163 = scalar_lea.vmem %s1, 8
  %v164 = vld [vmem:[%s163] sm:$0xf]
  %v166 = vsel %vm70, %v164, 0
  %168 = vmatprep.subr.bf16.mxu0 0
  %169 = vmatpush1.bf16.msra.mxu0 %v76
  %170 = vmatprep.subr.bf16.mxu0 0
  %171 = vmatpush1.bf16.msra.mxu0 0
  %172 = vmatprep.subr.bf16.mxu0 0
  %173 = vmatpush1.bf16.msra.mxu0 0
  %174 = vmatprep.subr.bf16.mxu0 0
  %175 = vmatpush1.bf16.msra.mxu0 0
  %176 = vmatprep.subr.bf16.mxu0 0
  %177 = vmatpush1.bf16.msra.mxu0 0
  %178 = vmatprep.subr.bf16.mxu0 0
  %179 = vmatpush1.bf16.msra.mxu0 0
  %180 = vmatprep.subr.bf16.mxu0 0
  %181 = vmatpush1.bf16.msra.mxu0 0
  %182 = vmatprep.subr.bf16.mxu0 0
  %183 = vmatpush1.bf16.msra.mxu0 0
  %184 = vmatprep.subr.bf16.mxu0 0
  %185 = vmatpush1.bf16.msra.mxu0 0
  %186 = vmatprep.subr.bf16.mxu0 0
  %187 = vmatpush1.bf16.msra.mxu0 0
  %188 = vmatprep.subr.bf16.mxu0 0
  %189 = vmatpush1.bf16.msra.mxu0 0
  %190 = vmatprep.subr.bf16.mxu0 0
  %191 = vmatpush1.bf16.msra.mxu0 0
  %192 = vmatprep.subr.bf16.mxu0 0
  %193 = vmatpush1.bf16.msra.mxu0 0
  %194 = vmatprep.subr.bf16.mxu0 0
  %195 = vmatpush1.bf16.msra.mxu0 0
  %196 = vmatprep.subr.bf16.mxu0 0
  %197 = vmatpush1.bf16.msra.mxu0 0
  %198 = vmatprep.subr.bf16.mxu0 0
  %199 = vmatpush1.bf16.msra.mxu0 0
  %200 = vmatprep.mubr.bf16.mxu0 0
  %201 = vmatmul.mubr.bf16.gmra.mrb[0].mxu0 %v166
  %v202 = vpop.f32.mrb[0].mxu0
  %v203 = vadd.f32 0.0, %v202
  %v204 = vpop.f32.mrb[0].mxu0
  %v205 = vpop.f32.mrb[0].mxu0
  %v206 = vpop.f32.mrb[0].mxu0
  %207 = vdwg.mxu0
  %vm208 = vcmask 1047808
  %209 = vrot.lane.b32.xlu0 %v113, 32
  %v210 = vpop.permute.xlu0 %209
  %v211 = vsel %vm208, %v210, %v113
  %212 = vrot.lane.b32.xlu0 %v211, 32
  %v213 = vpop.permute.xlu0 %212
  %v214 = vsel %vm208, %v213, %v113
  %v216 = vlaneseq
  %v217 = vshrl.u32 %v216, 7
  %v218 = vsub.s32 0, %v217
  %v219 = vrot.slane %v67, %v218
  %220 = vrot.lane.b32.xlu0 %v219, 31
  %v221 = vpop.permute.xlu0 %220
  %v223 = vmul.f32 %v214, %v221
  %225 = vrot.lane.b32.xlu0 %v158, 31
  %v226 = vpop.permute.xlu0 %225
  %v228 = vadd.f32 %v223, %v226
  %229 = vrot.lane.b32.xlu0 %v203, 32
  %v230 = vpop.permute.xlu0 %229
  %v231 = vsel %vm208, %v230, %v203
  %232 = vrot.lane.b32.xlu0 %v231, 32
  %v233 = vpop.permute.xlu0 %232
  %v234 = vsel %vm208, %v233, %v203
  %v236 = vlaneseq
  %v237 = vshrl.u32 %v236, 7
  %v238 = vsub.s32 0, %v237
  %v239 = vrot.slane %v68, %v238
  %240 = vrot.lane.b32.xlu0 %v239, 1
  %v241 = vpop.permute.xlu0 %240
  %v243 = vmul.f32 %v234, %v241
  %245 = vrot.lane.b32.xlu0 %v243, 30
  %v246 = vpop.permute.xlu0 %245
  %v248 = vadd.f32 %v228, %v246
  %v249 = vld [vmem:[%s2] sm:$0xff]
  %251 = vset.pattern.permute.xlu0 0
  %252 = vperm.xlu0 %251, %v249
  %v253 = vpop.permute.xlu0 %252
  %v255 = vmul.f32 %v248, %v253
  %v256 = vld [vmem:[%s3] sm:$0xff]
  %258 = vset.pattern.permute.xlu0 0
  %259 = vperm.xlu0 %258, %v256
  %v260 = vpop.permute.xlu0 %259
  %v262 = vadd.f32 %v255, %v260
  %v263 = vmax.f32 %v262, 0.0
  %v264 = vpack.c.bf16 %v263, %v263
  %v265 = vld [vmem:[%s4] sm:$0xf]
  %267 = vrot.lane.b32.xlu0 %v264, 97
  %v268 = vpop.permute.xlu0 %267
  %vm269 = vcmask 64512
  %v271 = vsel %vm269, %v265, 0
  %vm273 = vcmask 1043456
  %v275 = vsel %vm273, %v268, 0
  %277 = vmatprep.subr.bf16.mxu0 0
  %278 = vmatpush1.bf16.msra.mxu0 %v275
  %279 = vmatprep.subr.bf16.mxu0 0
  %280 = vmatpush1.bf16.msra.mxu0 0
  %281 = vmatprep.subr.bf16.mxu0 0
  %282 = vmatpush1.bf16.msra.mxu0 0
  %283 = vmatprep.subr.bf16.mxu0 0
  %284 = vmatpush1.bf16.msra.mxu0 0
  %285 = vmatprep.subr.bf16.mxu0 0
  %286 = vmatpush1.bf16.msra.mxu0 0
  %287 = vmatprep.subr.bf16.mxu0 0
  %288 = vmatpush1.bf16.msra.mxu0 0
  %289 = vmatprep.subr.bf16.mxu0 0
  %290 = vmatpush1.bf16.msra.mxu0 0
  %291 = vmatprep.subr.bf16.mxu0 0
  %292 = vmatpush1.bf16.msra.mxu0 0
  %293 = vmatprep.subr.bf16.mxu0 0
  %294 = vmatpush1.bf16.msra.mxu0 0
  %295 = vmatprep.subr.bf16.mxu0 0
  %296 = vmatpush1.bf16.msra.mxu0 0
  %297 = vmatprep.subr.bf16.mxu0 0
  %298 = vmatpush1.bf16.msra.mxu0 0
  %299 = vmatprep.subr.bf16.mxu0 0
  %300 = vmatpush1.bf16.msra.mxu0 0
  %301 = vmatprep.subr.bf16.mxu0 0
  %302 = vmatpush1.bf16.msra.mxu0 0
  %303 = vmatprep.subr.bf16.mxu0 0
  %304 = vmatpush1.bf16.msra.mxu0 0
  %305 = vmatprep.subr.bf16.mxu0 0
  %306 = vmatpush1.bf16.msra.mxu0 0
  %307 = vmatprep.subr.bf16.mxu0 0
  %308 = vmatpush1.bf16.msra.mxu0 0
  %309 = vmatprep.mubr.bf16.mxu0 0
  %310 = vmatmul.mubr.bf16.gmra.mrb[0].mxu0 %v271
  %v311 = vpop.f32.mrb[0].mxu0
  %v312 = vadd.f32 0.0, %v311
  %v313 = vpop.f32.mrb[0].mxu0
  %v314 = vpop.f32.mrb[0].mxu0
  %v315 = vpop.f32.mrb[0].mxu0
  %316 = vdwg.mxu0
  %s317 = scalar_lea.vmem %s4, 4
  %v318 = vld [vmem:[%s317] sm:$0xf]
  %v320 = vsel %vm269, %v318, 0
  %322 = vmatprep.subr.bf16.mxu0 0
  %323 = vmatpush1.bf16.msra.mxu0 %v275
  %324 = vmatprep.subr.bf16.mxu0 0
  %325 = vmatpush1.bf16.msra.mxu0 0
  %326 = vmatprep.subr.bf16.mxu0 0
  %327 = vmatpush1.bf16.msra.mxu0 0
  %328 = vmatprep.subr.bf16.mxu0 0
  %329 = vmatpush1.bf16.msra.mxu0 0
  %330 = vmatprep.subr.bf16.mxu0 0
  %331 = vmatpush1.bf16.msra.mxu0 0
  %332 = vmatprep.subr.bf16.mxu0 0
  %333 = vmatpush1.bf16.msra.mxu0 0
  %334 = vmatprep.subr.bf16.mxu0 0
  %335 = vmatpush1.bf16.msra.mxu0 0
  %336 = vmatprep.subr.bf16.mxu0 0
  %337 = vmatpush1.bf16.msra.mxu0 0
  %338 = vmatprep.subr.bf16.mxu0 0
  %339 = vmatpush1.bf16.msra.mxu0 0
  %340 = vmatprep.subr.bf16.mxu0 0
  %341 = vmatpush1.bf16.msra.mxu0 0
  %342 = vmatprep.subr.bf16.mxu0 0
  %343 = vmatpush1.bf16.msra.mxu0 0
  %344 = vmatprep.subr.bf16.mxu0 0
  %345 = vmatpush1.bf16.msra.mxu0 0
  %346 = vmatprep.subr.bf16.mxu0 0
  %347 = vmatpush1.bf16.msra.mxu0 0
  %348 = vmatprep.subr.bf16.mxu0 0
  %349 = vmatpush1.bf16.msra.mxu0 0
  %350 = vmatprep.subr.bf16.mxu0 0
  %351 = vmatpush1.bf16.msra.mxu0 0
  %352 = vmatprep.subr.bf16.mxu0 0
  %353 = vmatpush1.bf16.msra.mxu0 0
  %354 = vmatprep.mubr.bf16.mxu0 0
  %355 = vmatmul.mubr.bf16.gmra.mrb[0].mxu0 %v320
  %v356 = vpop.f32.mrb[0].mxu0
  %v357 = vadd.f32 0.0, %v356
  %v358 = vpop.f32.mrb[0].mxu0
  %v359 = vpop.f32.mrb[0].mxu0
  %v360 = vpop.f32.mrb[0].mxu0
  %361 = vdwg.mxu0
  %s362 = scalar_lea.vmem %s4, 8
  %v363 = vld [vmem:[%s362] sm:$0xf]
  %v365 = vsel %vm269, %v363, 0
  %367 = vmatprep.subr.bf16.mxu0 0
  %368 = vmatpush1.bf16.msra.mxu0 %v275
  %369 = vmatprep.subr.bf16.mxu0 0
  %370 = vmatpush1.bf16.msra.mxu0 0
  %371 = vmatprep.subr.bf16.mxu0 0
  %372 = vmatpush1.bf16.msra.mxu0 0
  %373 = vmatprep.subr.bf16.mxu0 0
  %374 = vmatpush1.bf16.msra.mxu0 0
  %375 = vmatprep.subr.bf16.mxu0 0
  %376 = vmatpush1.bf16.msra.mxu0 0
  %377 = vmatprep.subr.bf16.mxu0 0
  %378 = vmatpush1.bf16.msra.mxu0 0
  %379 = vmatprep.subr.bf16.mxu0 0
  %380 = vmatpush1.bf16.msra.mxu0 0
  %381 = vmatprep.subr.bf16.mxu0 0
  %382 = vmatpush1.bf16.msra.mxu0 0
  %383 = vmatprep.subr.bf16.mxu0 0
  %384 = vmatpush1.bf16.msra.mxu0 0
  %385 = vmatprep.subr.bf16.mxu0 0
  %386 = vmatpush1.bf16.msra.mxu0 0
  %387 = vmatprep.subr.bf16.mxu0 0
  %388 = vmatpush1.bf16.msra.mxu0 0
  %389 = vmatprep.subr.bf16.mxu0 0
  %390 = vmatpush1.bf16.msra.mxu0 0
  %391 = vmatprep.subr.bf16.mxu0 0
  %392 = vmatpush1.bf16.msra.mxu0 0
  %393 = vmatprep.subr.bf16.mxu0 0
  %394 = vmatpush1.bf16.msra.mxu0 0
  %395 = vmatprep.subr.bf16.mxu0 0
  %396 = vmatpush1.bf16.msra.mxu0 0
  %397 = vmatprep.subr.bf16.mxu0 0
  %398 = vmatpush1.bf16.msra.mxu0 0
  %399 = vmatprep.mubr.bf16.mxu0 0
  %400 = vmatmul.mubr.bf16.gmra.mrb[0].mxu0 %v365
  %v401 = vpop.f32.mrb[0].mxu0
  %v402 = vadd.f32 0.0, %v401
  %v403 = vpop.f32.mrb[0].mxu0
  %v404 = vpop.f32.mrb[0].mxu0
  %v405 = vpop.f32.mrb[0].mxu0
  %406 = vdwg.mxu0
  %407 = vrot.lane.b32.xlu0 %v312, 32
  %v408 = vpop.permute.xlu0 %407
  %v409 = vsel %vm208, %v408, %v312
  %410 = vrot.lane.b32.xlu0 %v409, 32
  %v411 = vpop.permute.xlu0 %410
  %v412 = vsel %vm208, %v411, %v312
  %v413 = vmul.f32 %v412, %v221
  %415 = vrot.lane.b32.xlu0 %v357, 31
  %v416 = vpop.permute.xlu0 %415
  %v418 = vadd.f32 %v413, %v416
  %419 = vrot.lane.b32.xlu0 %v402, 32
  %v420 = vpop.permute.xlu0 %419
  %v421 = vsel %vm208, %v420, %v402
  %422 = vrot.lane.b32.xlu0 %v421, 32
  %v423 = vpop.permute.xlu0 %422
  %v424 = vsel %vm208, %v423, %v402
  %v425 = vmul.f32 %v424, %v241
  %427 = vrot.lane.b32.xlu0 %v425, 30
  %v428 = vpop.permute.xlu0 %427
  %v430 = vadd.f32 %v418, %v428
  %v431 = vld [vmem:[%s5] sm:$0xff]
  %433 = vset.pattern.permute.xlu0 0
  %434 = vperm.xlu0 %433, %v431
  %v435 = vpop.permute.xlu0 %434
  %v437 = vmul.f32 %v430, %v435
  %v438 = vld [vmem:[%s6] sm:$0xff]
  %440 = vset.pattern.permute.xlu0 0
  %441 = vperm.xlu0 %440, %v438
  %v442 = vpop.permute.xlu0 %441
  %v444 = vadd.f32 %v437, %v442
  %v445 = vand.u32 2147483647, %v444
  %v446 = vld [vmem:[%s15] sm:$0xff]
  %v447 = vld [vmem:[%s15 + $0x8] sm:$0xff]
  %v448 = vld [vmem:[%s15 + $0x10] sm:$0xff]
  %v449 = vld [vmem:[%s15 + $0x18] sm:$0xff]
  %451 = vrot.lane.b32.xlu0 %v445, 97
  %v452 = vpop.permute.xlu0 %451
  %vm453 = vcmask 261120
  %v454 = vsel %vm453, %v452, 0
  %456 = vmatprep.subr.mxu0 0.0
  %457 = vmatpush1.msra.mxu0 %v446
  %458 = vmatprep.subr.mxu0 0.0
  %459 = vmatpush1.msra.mxu0 %v447
  %460 = vmatprep.subr.mxu0 0.0
  %461 = vmatpush1.msra.mxu0 %v448
  %462 = vmatprep.subr.mxu0 0.0
  %463 = vmatpush1.msra.mxu0 %v449
  %464 = vmatprep.subr.mxu0 0.0
  %465 = vmatpush1.msra.mxu0 0.0
  %466 = vmatprep.subr.mxu0 0.0
  %467 = vmatpush1.msra.mxu0 0.0
  %468 = vmatprep.subr.mxu0 0.0
  %469 = vmatpush1.msra.mxu0 0.0
  %470 = vmatprep.subr.mxu0 0.0
  %471 = vmatpush1.msra.mxu0 0.0
  %472 = vmatprep.subr.mxu0 0.0
  %473 = vmatpush1.msra.mxu0 0.0
  %474 = vmatprep.subr.mxu0 0.0
  %475 = vmatpush1.msra.mxu0 0.0
  %476 = vmatprep.subr.mxu0 0.0
  %477 = vmatpush1.msra.mxu0 0.0
  %478 = vmatprep.subr.mxu0 0.0
  %479 = vmatpush1.msra.mxu0 0.0
  %480 = vmatprep.subr.mxu0 0.0
  %481 = vmatpush1.msra.mxu0 0.0
  %482 = vmatprep.subr.mxu0 0.0
  %483 = vmatpush1.msra.mxu0 0.0
  %484 = vmatprep.subr.mxu0 0.0
  %485 = vmatpush1.msra.mxu0 0.0
  %486 = vmatprep.subr.mxu0 0.0
  %487 = vmatpush1.msra.mxu0 0.0
  %488 = vmatprep.subr.mxu0 0.0
  %489 = vmatpush1.msra.mxu0 0.0
  %490 = vmatprep.subr.mxu0 0.0
  %491 = vmatpush1.msra.mxu0 0.0
  %492 = vmatprep.subr.mxu0 0.0
  %493 = vmatpush1.msra.mxu0 0.0
  %494 = vmatprep.subr.mxu0 0.0
  %495 = vmatpush1.msra.mxu0 0.0
  %496 = vmatprep.subr.mxu0 0.0
  %497 = vmatpush1.msra.mxu0 0.0
  %498 = vmatprep.subr.mxu0 0.0
  %499 = vmatpush1.msra.mxu0 0.0
  %500 = vmatprep.subr.mxu0 0.0
  %501 = vmatpush1.msra.mxu0 0.0
  %502 = vmatprep.subr.mxu0 0.0
  %503 = vmatpush1.msra.mxu0 0.0
  %504 = vmatprep.subr.mxu0 0.0
  %505 = vmatpush1.msra.mxu0 0.0
  %506 = vmatprep.subr.mxu0 0.0
  %507 = vmatpush1.msra.mxu0 0.0
  %508 = vmatprep.subr.mxu0 0.0
  %509 = vmatpush1.msra.mxu0 0.0
  %510 = vmatprep.subr.mxu0 0.0
  %511 = vmatpush1.msra.mxu0 0.0
  %512 = vmatprep.subr.mxu0 0.0
  %513 = vmatpush1.msra.mxu0 0.0
  %514 = vmatprep.subr.mxu0 0.0
  %515 = vmatpush1.msra.mxu0 0.0
  %516 = vmatprep.subr.mxu0 0.0
  %517 = vmatpush1.msra.mxu0 0.0
  %518 = vmatprep.subr.mxu0 0.0
  %519 = vmatpush1.msra.mxu0 0.0
  %520 = vmatprep.mubr.f32.mxu0 0.0
  %521 = vmatmul.mubr.f32.gmra.mrb[0].mxu0 %v454
  %v522 = vpop.f32.mrb[0].mxu0
  %v523 = vadd.f32 0.0, %v522
  %v524 = vpop.f32.mrb[0].mxu0
  %525 = vdwg.mxu0
  %v526 = vld [vmem:[%s7] sm:$0xff]
  %v527 = vld [vmem:[%s8] sm:$0xff]
  %529 = vset.pattern.permute.xlu0 0
  %530 = vperm.xlu0 %529, %v527
  %v531 = vpop.permute.xlu0 %530
  %v534 = vsel %vm269, %v526, 0
  %536 = vmatprep.subr.mxu0 0.0
  %537 = vmatpush1.msra.mxu0 %v523
  %538 = vmatprep.subr.mxu0 0.0
  %539 = vmatpush1.msra.mxu0 0.0
  %540 = vmatprep.subr.mxu0 0.0
  %541 = vmatpush1.msra.mxu0 0.0
  %542 = vmatprep.subr.mxu0 0.0
  %543 = vmatpush1.msra.mxu0 0.0
  %544 = vmatprep.subr.mxu0 0.0
  %545 = vmatpush1.msra.mxu0 0.0
  %546 = vmatprep.subr.mxu0 0.0
  %547 = vmatpush1.msra.mxu0 0.0
  %548 = vmatprep.subr.mxu0 0.0
  %549 = vmatpush1.msra.mxu0 0.0
  %550 = vmatprep.subr.mxu0 0.0
  %551 = vmatpush1.msra.mxu0 0.0
  %552 = vmatprep.subr.mxu0 0.0
  %553 = vmatpush1.msra.mxu0 0.0
  %554 = vmatprep.subr.mxu0 0.0
  %555 = vmatpush1.msra.mxu0 0.0
  %556 = vmatprep.subr.mxu0 0.0
  %557 = vmatpush1.msra.mxu0 0.0
  %558 = vmatprep.subr.mxu0 0.0
  %559 = vmatpush1.msra.mxu0 0.0
  %560 = vmatprep.subr.mxu0 0.0
  %561 = vmatpush1.msra.mxu0 0.0
  %562 = vmatprep.subr.mxu0 0.0
  %563 = vmatpush1.msra.mxu0 0.0
  %564 = vmatprep.subr.mxu0 0.0
  %565 = vmatpush1.msra.mxu0 0.0
  %566 = vmatprep.subr.mxu0 0.0
  %567 = vmatpush1.msra.mxu0 0.0
  %568 = vmatprep.subr.mxu0 0.0
  %569 = vmatpush1.msra.mxu0 0.0
  %570 = vmatprep.subr.mxu0 0.0
  %571 = vmatpush1.msra.mxu0 0.0
  %572 = vmatprep.subr.mxu0 0.0
  %573 = vmatpush1.msra.mxu0 0.0
  %574 = vmatprep.subr.mxu0 0.0
  %575 = vmatpush1.msra.mxu0 0.0
  %576 = vmatprep.subr.mxu0 0.0
  %577 = vmatpush1.msra.mxu0 0.0
  %578 = vmatprep.subr.mxu0 0.0
  %579 = vmatpush1.msra.mxu0 0.0
  %580 = vmatprep.subr.mxu0 0.0
  %581 = vmatpush1.msra.mxu0 0.0
  %582 = vmatprep.subr.mxu0 0.0
  %583 = vmatpush1.msra.mxu0 0.0
  %584 = vmatprep.subr.mxu0 0.0
  %585 = vmatpush1.msra.mxu0 0.0
  %586 = vmatprep.subr.mxu0 0.0
  %587 = vmatpush1.msra.mxu0 0.0
  %588 = vmatprep.subr.mxu0 0.0
  %589 = vmatpush1.msra.mxu0 0.0
  %590 = vmatprep.subr.mxu0 0.0
  %591 = vmatpush1.msra.mxu0 0.0
  %592 = vmatprep.subr.mxu0 0.0
  %593 = vmatpush1.msra.mxu0 0.0
  %594 = vmatprep.subr.mxu0 0.0
  %595 = vmatpush1.msra.mxu0 0.0
  %596 = vmatprep.subr.mxu0 0.0
  %597 = vmatpush1.msra.mxu0 0.0
  %598 = vmatprep.subr.mxu0 0.0
  %599 = vmatpush1.msra.mxu0 0.0
  %600 = vmatprep.mubr.f32.mxu0 0.0
  %601 = vmatmul.mubr.f32.gmra.mrb[0].mxu0 %v534
  %v602 = vpop.f32.mrb[0].mxu0
  %v603 = vadd.f32 %v531, %v602
  %v604 = vpop.f32.mrb[0].mxu0
  %605 = vdwg.mxu0
  %v606 = vld [vmem:[%s9] sm:$0xff]
  %608 = vset.pattern.permute.xlu0 0
  %609 = vperm.xlu0 %608, %v606
  %v610 = vpop.permute.xlu0 %609
  %v612 = vmul.f32 %v603, %v610
  %v613 = vld [vmem:[%s10] sm:$0xff]
  %615 = vset.pattern.permute.xlu0 0
  %616 = vperm.xlu0 %615, %v613
  %v617 = vpop.permute.xlu0 %616
  %v619 = vadd.f32 %v612, %v617
  %v620 = vmax.f32 %v619, 0.0
  %v621 = vld [vmem:[%s11] sm:$0xff]
  %v622 = vld [vmem:[%s12] sm:$0xff]
  %624 = vset.pattern.permute.xlu0 0
  %625 = vperm.xlu0 %624, %v622
  %v626 = vpop.permute.xlu0 %625
  %v629 = vsel %vm269, %v621, 0
  %631 = vmatprep.subr.mxu0 0.0
  %632 = vmatpush1.msra.mxu0 %v620
  %633 = vmatprep.subr.mxu0 0.0
  %634 = vmatpush1.msra.mxu0 0.0
  %635 = vmatprep.subr.mxu0 0.0
  %636 = vmatpush1.msra.mxu0 0.0
  %637 = vmatprep.subr.mxu0 0.0
  %638 = vmatpush1.msra.mxu0 0.0
  %639 = vmatprep.subr.mxu0 0.0
  %640 = vmatpush1.msra.mxu0 0.0
  %641 = vmatprep.subr.mxu0 0.0
  %642 = vmatpush1.msra.mxu0 0.0
  %643 = vmatprep.subr.mxu0 0.0
  %644 = vmatpush1.msra.mxu0 0.0
  %645 = vmatprep.subr.mxu0 0.0
  %646 = vmatpush1.msra.mxu0 0.0
  %647 = vmatprep.subr.mxu0 0.0
  %648 = vmatpush1.msra.mxu0 0.0
  %649 = vmatprep.subr.mxu0 0.0
  %650 = vmatpush1.msra.mxu0 0.0
  %651 = vmatprep.subr.mxu0 0.0
  %652 = vmatpush1.msra.mxu0 0.0
  %653 = vmatprep.subr.mxu0 0.0
  %654 = vmatpush1.msra.mxu0 0.0
  %655 = vmatprep.subr.mxu0 0.0
  %656 = vmatpush1.msra.mxu0 0.0
  %657 = vmatprep.subr.mxu0 0.0
  %658 = vmatpush1.msra.mxu0 0.0
  %659 = vmatprep.subr.mxu0 0.0
  %660 = vmatpush1.msra.mxu0 0.0
  %661 = vmatprep.subr.mxu0 0.0
  %662 = vmatpush1.msra.mxu0 0.0
  %663 = vmatprep.subr.mxu0 0.0
  %664 = vmatpush1.msra.mxu0 0.0
  %665 = vmatprep.subr.mxu0 0.0
  %666 = vmatpush1.msra.mxu0 0.0
  %667 = vmatprep.subr.mxu0 0.0
  %668 = vmatpush1.msra.mxu0 0.0
  %669 = vmatprep.subr.mxu0 0.0
  %670 = vmatpush1.msra.mxu0 0.0
  %671 = vmatprep.subr.mxu0 0.0
  %672 = vmatpush1.msra.mxu0 0.0
  %673 = vmatprep.subr.mxu0 0.0
  %674 = vmatpush1.msra.mxu0 0.0
  %675 = vmatprep.subr.mxu0 0.0
  %676 = vmatpush1.msra.mxu0 0.0
  %677 = vmatprep.subr.mxu0 0.0
  %678 = vmatpush1.msra.mxu0 0.0
  %679 = vmatprep.subr.mxu0 0.0
  %680 = vmatpush1.msra.mxu0 0.0
  %681 = vmatprep.subr.mxu0 0.0
  %682 = vmatpush1.msra.mxu0 0.0
  %683 = vmatprep.subr.mxu0 0.0
  %684 = vmatpush1.msra.mxu0 0.0
  %685 = vmatprep.subr.mxu0 0.0
  %686 = vmatpush1.msra.mxu0 0.0
  %687 = vmatprep.subr.mxu0 0.0
  %688 = vmatpush1.msra.mxu0 0.0
  %689 = vmatprep.subr.mxu0 0.0
  %690 = vmatpush1.msra.mxu0 0.0
  %691 = vmatprep.subr.mxu0 0.0
  %692 = vmatpush1.msra.mxu0 0.0
  %693 = vmatprep.subr.mxu0 0.0
  %694 = vmatpush1.msra.mxu0 0.0
  %695 = vmatprep.mubr.f32.mxu0 0.0
  %696 = vmatmul.mubr.f32.gmra.mrb[0].mxu0 %v629
  %v697 = vpop.f32.mrb[0].mxu0
  %v698 = vadd.f32 %v626, %v697
  %v699 = vpop.f32.mrb[0].mxu0
  %700 = vdwg.mxu0
  %v701 = vxor.u32 %v698, 2147483648
  %v702 = vmul.f32 %v701, 1.442695
  %v703 = vpow.pop %v702
  %v704 = vadd.f32 %v703, 1.0
  %v705 = vrcp.pop %v704
  %v706 = vmul.f32 1.0, %v705
  %v707 = vmul.f32 %v523, %v706
  %v708 = vld [vmem:[%s16] sm:$0x3]
  %vm709 = vcmask 15360
  %v711 = vsel %vm709, %v707, 0
  %v714 = vsel %vm74, %v708, 0
  %716 = vmatprep.subr.mxu0 0.0
  %717 = vmatpush1.msra.mxu0 %v714
  %718 = vmatprep.subr.mxu0 0.0
  %719 = vmatpush1.msra.mxu0 0.0
  %720 = vmatprep.subr.mxu0 0.0
  %721 = vmatpush1.msra.mxu0 0.0
  %722 = vmatprep.subr.mxu0 0.0
  %723 = vmatpush1.msra.mxu0 0.0
  %724 = vmatprep.subr.mxu0 0.0
  %725 = vmatpush1.msra.mxu0 0.0
  %726 = vmatprep.subr.mxu0 0.0
  %727 = vmatpush1.msra.mxu0 0.0
  %728 = vmatprep.subr.mxu0 0.0
  %729 = vmatpush1.msra.mxu0 0.0
  %730 = vmatprep.subr.mxu0 0.0
  %731 = vmatpush1.msra.mxu0 0.0
  %732 = vmatprep.subr.mxu0 0.0
  %733 = vmatpush1.msra.mxu0 0.0
  %734 = vmatprep.subr.mxu0 0.0
  %735 = vmatpush1.msra.mxu0 0.0
  %736 = vmatprep.subr.mxu0 0.0
  %737 = vmatpush1.msra.mxu0 0.0
  %738 = vmatprep.subr.mxu0 0.0
  %739 = vmatpush1.msra.mxu0 0.0
  %740 = vmatprep.subr.mxu0 0.0
  %741 = vmatpush1.msra.mxu0 0.0
  %742 = vmatprep.subr.mxu0 0.0
  %743 = vmatpush1.msra.mxu0 0.0
  %744 = vmatprep.subr.mxu0 0.0
  %745 = vmatpush1.msra.mxu0 0.0
  %746 = vmatprep.subr.mxu0 0.0
  %747 = vmatpush1.msra.mxu0 0.0
  %748 = vmatprep.subr.mxu0 0.0
  %749 = vmatpush1.msra.mxu0 0.0
  %750 = vmatprep.subr.mxu0 0.0
  %751 = vmatpush1.msra.mxu0 0.0
  %752 = vmatprep.subr.mxu0 0.0
  %753 = vmatpush1.msra.mxu0 0.0
  %754 = vmatprep.subr.mxu0 0.0
  %755 = vmatpush1.msra.mxu0 0.0
  %756 = vmatprep.subr.mxu0 0.0
  %757 = vmatpush1.msra.mxu0 0.0
  %758 = vmatprep.subr.mxu0 0.0
  %759 = vmatpush1.msra.mxu0 0.0
  %760 = vmatprep.subr.mxu0 0.0
  %761 = vmatpush1.msra.mxu0 0.0
  %762 = vmatprep.subr.mxu0 0.0
  %763 = vmatpush1.msra.mxu0 0.0
  %764 = vmatprep.subr.mxu0 0.0
  %765 = vmatpush1.msra.mxu0 0.0
  %766 = vmatprep.subr.mxu0 0.0
  %767 = vmatpush1.msra.mxu0 0.0
  %768 = vmatprep.subr.mxu0 0.0
  %769 = vmatpush1.msra.mxu0 0.0
  %770 = vmatprep.subr.mxu0 0.0
  %771 = vmatpush1.msra.mxu0 0.0
  %772 = vmatprep.subr.mxu0 0.0
  %773 = vmatpush1.msra.mxu0 0.0
  %774 = vmatprep.subr.mxu0 0.0
  %775 = vmatpush1.msra.mxu0 0.0
  %776 = vmatprep.subr.mxu0 0.0
  %777 = vmatpush1.msra.mxu0 0.0
  %778 = vmatprep.subr.mxu0 0.0
  %779 = vmatpush1.msra.mxu0 0.0
  %780 = vmatprep.mubr.f32.mxu0 0.0
  %781 = vmatmul.mubr.f32.gmra.mrb[0].mxu0 %v711
  %v782 = vpop.f32.mrb[0].mxu0
  %v783 = vadd.f32 0.0, %v782
  %v784 = vpop.f32.mrb[0].mxu0
  %785 = vdwg.mxu0
  %787 = vrot.lane.b32.xlu0 %v783, 31
  %v788 = vpop.permute.xlu0 %787
  %v790 = vsub.f32 %v445, %v788
  %v791 = vmax.f32 %v790, 0.0
  %vm792 = vcmp.ge.f32.partialorder %v444, 0.0
  %v793 = vsub.f32 0.0, %v791
  %v794 = vsel %vm792, %v791, %v793
  %v795 = vld [vmem:[%s17] sm:$0xf]
  %v797 = vsel %vm70, %v795, 0
  %799 = vmatprep.subr.bf16.mxu0 0
  %800 = vmatpush1.bf16.msra.mxu0 %v76
  %801 = vmatprep.subr.bf16.mxu0 0
  %802 = vmatpush1.bf16.msra.mxu0 0
  %803 = vmatprep.subr.bf16.mxu0 0
  %804 = vmatpush1.bf16.msra.mxu0 0
  %805 = vmatprep.subr.bf16.mxu0 0
  %806 = vmatpush1.bf16.msra.mxu0 0
  %807 = vmatprep.subr.bf16.mxu0 0
  %808 = vmatpush1.bf16.msra.mxu0 0
  %809 = vmatprep.subr.bf16.mxu0 0
  %810 = vmatpush1.bf16.msra.mxu0 0
  %811 = vmatprep.subr.bf16.mxu0 0
  %812 = vmatpush1.bf16.msra.mxu0 0
  %813 = vmatprep.subr.bf16.mxu0 0
  %814 = vmatpush1.bf16.msra.mxu0 0
  %815 = vmatprep.subr.bf16.mxu0 0
  %816 = vmatpush1.bf16.msra.mxu0 0
  %817 = vmatprep.subr.bf16.mxu0 0
  %818 = vmatpush1.bf16.msra.mxu0 0
  %819 = vmatprep.subr.bf16.mxu0 0
  %820 = vmatpush1.bf16.msra.mxu0 0
  %821 = vmatprep.subr.bf16.mxu0 0
  %822 = vmatpush1.bf16.msra.mxu0 0
  %823 = vmatprep.subr.bf16.mxu0 0
  %824 = vmatpush1.bf16.msra.mxu0 0
  %825 = vmatprep.subr.bf16.mxu0 0
  %826 = vmatpush1.bf16.msra.mxu0 0
  %827 = vmatprep.subr.bf16.mxu0 0
  %828 = vmatpush1.bf16.msra.mxu0 0
  %829 = vmatprep.subr.bf16.mxu0 0
  %830 = vmatpush1.bf16.msra.mxu0 0
  %831 = vmatprep.mubr.bf16.mxu0 0
  %832 = vmatmul.mubr.bf16.gmra.mrb[0].mxu0 %v797
  %v833 = vpop.f32.mrb[0].mxu0
  %v834 = vadd.f32 0.0, %v833
  %v835 = vpop.f32.mrb[0].mxu0
  %v836 = vpop.f32.mrb[0].mxu0
  %v837 = vpop.f32.mrb[0].mxu0
  %838 = vdwg.mxu0
  %v839 = vld [vmem:[%s18] sm:$0xff]
  %841 = vset.pattern.permute.xlu0 0
  %842 = vperm.xlu0 %841, %v839
  %v843 = vpop.permute.xlu0 %842
  %v845 = vmul.f32 %v834, %v843
  %v846 = vld [vmem:[%s19] sm:$0xff]
  %848 = vset.pattern.permute.xlu0 0
  %849 = vperm.xlu0 %848, %v846
  %v850 = vpop.permute.xlu0 %849
  %v852 = vadd.f32 %v845, %v850
  %854 = vrot.lane.b32.xlu0 %v852, 31
  %v855 = vpop.permute.xlu0 %854
  %v857 = vadd.f32 %v794, %v855
  %v858 = vmax.f32 %v857, 0.0
  %v859 = vpack.c.bf16 %v858, %v858
  %v861 = vunpack.c.l.b16 %v859
  %v862 = vpack.c.b16 %v861, %v861
  %863 = vrot.lane.b32.xlu0 %v862, 97
  %v864 = vpop.permute.xlu0 %863
  %vm866 = vcmask 257024
  %867 = vst.msk [vmem:[%s20] sm:$0xf] %vm866, %v864
  // Predicated region
  $region82: #{basic_block_forward.1} parent=0 // pred_check
    _
  $region83: #{basic_block_forward.1} parent=0 // pred_check_branch
    %869 = sbr.rel (0) target = $region85
  $region84: #{basic_block_forward.1} parent=0 // pred_region
    _
  $region85: #{basic_block_forward.1} parent=0 // pred_fallthru
    _
  // Predicated region
  $region86: #{basic_block_forward.1} parent=0 // pred_check
    _
  $region87: #{basic_block_forward.1} parent=0 // pred_check_branch
    %871 = sbr.rel (0) target = $region89
  $region88: #{basic_block_forward.1} parent=0 // pred_region
    _
  $region89: #{basic_block_forward.1} parent=0 // pred_fallthru
    _

</llo_original>
